<compile_context>
chip_gen: v6e
topology: v6e:2x2x1
jax: 0.10.0
libtpu: 0.0.40
codegen_flags: <defaults>
</compile_context>

<pallas_src>
import jax
import jax.numpy as jnp
from jax.experimental import pallas as pl
from jax.experimental.pallas import tpu as pltpu


def _round_up(x, m):
    return ((x + m - 1) // m) * m


def _pick_batch_tile(B, cap=512):
    """Largest batch tile <= cap. Whole batch if it fits (single grid step);
    otherwise the largest multiple-of-8 divisor of B; otherwise B itself
    (a full-extent block is always layout-legal)."""
    if B <= cap:
        return B
    for tb in range(cap - cap % 8, 7, -8):
        if B % tb == 0:
            return tb
    return B


# ---------------------------------------------------------------------------
# Single-step forward: out = MLP(cat([z, action]))
# ---------------------------------------------------------------------------

def _make_mlp_kernel(latent_dim, action_dim):
    def kernel(z_ref, a_ref, w1_ref, b1_ref, w2_ref, b2_ref, w3_ref, b3_ref,
               o_ref, x_ref):
        # x_ref: bf16 [tb, padded_in] scratch holding [z | action | 0].
        # Zeroing it every step is a ~100 KiB VMEM store (negligible) and keeps
        # the padding columns valid even when the grid is split across cores.
        x_ref[...] = jnp.zeros_like(x_ref)
        x_ref[:, :latent_dim] = z_ref[...].astype(jnp.bfloat16)
        x_ref[:, latent_dim:latent_dim + action_dim] = a_ref[...].astype(jnp.bfloat16)

        # Layer 1: single K=padded_in contraction (fused concat) + ReLU.
        h1 = jnp.dot(x_ref[...], w1_ref[...],
                     preferred_element_type=jnp.float32) + b1_ref[...]
        h1 = jnp.maximum(h1, 0.0)

        # Layer 2: Linear + ReLU.
        h2 = jnp.dot(h1.astype(jnp.bfloat16), w2_ref[...],
                     preferred_element_type=jnp.float32) + b2_ref[...]
        h2 = jnp.maximum(h2, 0.0)

        # Layer 3: Linear (no activation).
        out = jnp.dot(h2.astype(jnp.bfloat16), w3_ref[...],
                      preferred_element_type=jnp.float32) + b3_ref[...]
        o_ref[...] = out.astype(o_ref.dtype)

    return kernel


def dynamics_model_forward(z, action, params):
    """z: [B, latent] f32, action: [B, action_dim] f32 -> [B, latent] f32."""
    w1p, b1, w2, b2, w3, b3 = params
    B, latent = z.shape
    _, action_dim = action.shape
    padded_in, hidden = w1p.shape
    out_dim = w3.shape[1]

    tb = _pick_batch_tile(B)
    grid_len = B // tb
    grid = (grid_len,)

    row_spec = lambda shape: pl.BlockSpec(shape, lambda i: (i, 0))     # batch-tiled
    const_spec = lambda shape: pl.BlockSpec(shape, lambda i: (0, 0))   # VMEM-resident

    # Megacore split only pays off with >= 2 steps per core; otherwise it just
    # duplicates the weight DMA into both cores' VMEM.
    semantics = ("parallel",) if grid_len >= 4 else ("arbitrary",)

    weight_bytes = (w1p.size + w2.size + w3.size) * 2 \
        + (b1.size + b2.size + b3.size) * 4
    act_tile_bytes = tb * (latent + action_dim + out_dim) * 4
    scratch_bytes = tb * padded_in * 2
    vmem_limit = int(min(max(8 << 20,
                             2 * weight_bytes + 3 * act_tile_bytes
                             + scratch_bytes + (2 << 20)),
                         32 << 20))

    flops = 2 * B * (padded_in * hidden + hidden * hidden + hidden * out_dim)
    bytes_accessed = weight_bytes + (z.size + action.size + B * out_dim) * 4
    cost = pl.CostEstimate(flops=flops, transcendentals=0,
                           bytes_accessed=bytes_accessed)

    return pl.pallas_call(
        _make_mlp_kernel(latent, action_dim),
        out_shape=jax.ShapeDtypeStruct((B, out_dim), jnp.float32),
        grid=grid,
        in_specs=[
            row_spec((tb, latent)),            # z
            row_spec((tb, action_dim)),        # action
            const_spec((padded_in, hidden)),   # W1 (zero-padded, bf16)
            const_spec((1, hidden)),           # b1 (f32)
            const_spec((hidden, hidden)),      # W2 (bf16)
            const_spec((1, hidden)),           # b2 (f32)
            const_spec((hidden, out_dim)),     # W3 (bf16)
            const_spec((1, out_dim)),          # b3 (f32)
        ],
        out_specs=row_spec((tb, out_dim)),
        scratch_shapes=[pltpu.VMEM((tb, padded_in), jnp.bfloat16)],
        compiler_params=pltpu.CompilerParams(
            dimension_semantics=semantics,
            vmem_limit_bytes=vmem_limit,
        ),
        cost_estimate=cost,
    )(z, action, w1p, b1, w2, b2, w3, b3)


# ---------------------------------------------------------------------------
# Multi-step rollout: z_{t+1} = MLP(cat([z_t, a_t])), time loop inside kernel
# ---------------------------------------------------------------------------

def _make_rollout_kernel(latent_dim, action_dim):
    def kernel(z0_ref, a_ref, w1_ref, b1_ref, w2_ref, b2_ref, w3_ref, b3_ref,
               zs_ref, z_carry, x_ref):
        t = pl.program_id(0)

        @pl.when(t == 0)
        def _():
            z_carry[...] = z0_ref[...]

        x_ref[...] = jnp.zeros_like(x_ref)
        x_ref[:, :latent_dim] = z_carry[...].astype(jnp.bfloat16)
        x_ref[:, latent_dim:latent_dim + action_dim] = a_ref[...].astype(jnp.bfloat16)

        h1 = jnp.maximum(
            jnp.dot(x_ref[...], w1_ref[...],
                    preferred_element_type=jnp.float32) + b1_ref[...], 0.0)
        h2 = jnp.maximum(
            jnp.dot(h1.astype(jnp.bfloat16), w2_ref[...],
                    preferred_element_type=jnp.float32) + b2_ref[...], 0.0)
        z_next = jnp.dot(h2.astype(jnp.bfloat16), w3_ref[...],
                         preferred_element_type=jnp.float32) + b3_ref[...]

        z_carry[...] = z_next
        zs_ref[...] = z_next.astype(zs_ref.dtype)

    return kernel


def dynamics_rollout(z0, actions, params):
    """z0: [B, latent] f32, actions: [T, B, action_dim] f32 -> [T, B, latent] f32.
    Weights are DMA'd once and the latent state lives in VMEM for the whole
    rollout; one kernel dispatch covers all T steps."""
    w1p, b1, w2, b2, w3, b3 = params
    B, latent = z0.shape
    T, _, action_dim = actions.shape
    padded_in, hidden = w1p.shape
    out_dim = w3.shape[1]
    assert out_dim == latent, "rollout requires out_dim == latent_dim"

    const2 = lambda shape: pl.BlockSpec(shape, lambda t: (0, 0))

    weight_bytes = (w1p.size + w2.size + w3.size) * 2 \
        + (b1.size + b2.size + b3.size) * 4
    flops = 2 * T * B * (padded_in * hidden + hidden * hidden + hidden * out_dim)
    bytes_accessed = weight_bytes \
        + (z0.size + actions.size + T * B * out_dim) * 4
    cost = pl.CostEstimate(flops=flops, transcendentals=0,
                           bytes_accessed=bytes_accessed)

    vmem_limit = int(min(max(8 << 20,
                             2 * weight_bytes
                             + 8 * B * (latent + action_dim + out_dim) * 4
                             + B * padded_in * 2 + (2 << 20)),
                         32 << 20))

    return pl.pallas_call(
        _make_rollout_kernel(latent, action_dim),
        out_shape=jax.ShapeDtypeStruct((T, B, out_dim), jnp.float32),
        grid=(T,),
        in_specs=[
            const2((B, latent)),                                        # z0 (resident)
            pl.BlockSpec((None, B, action_dim), lambda t: (t, 0, 0)),   # a_t (streamed)
            const2((padded_in, hidden)),                                # W1 (bf16)
            const2((1, hidden)),                                        # b1
            const2((hidden, hidden)),                                   # W2 (bf16)
            const2((1, hidden)),                                        # b2
            const2((hidden, out_dim)),                                  # W3 (bf16)
            const2((1, out_dim)),                                       # b3
        ],
        out_specs=pl.BlockSpec((None, B, out_dim), lambda t: (t, 0, 0)),
        scratch_shapes=[
            pltpu.VMEM((B, latent), jnp.float32),       # carried latent state (f32)
            pltpu.VMEM((B, padded_in), jnp.bfloat16),   # [z | a | 0] assembly buffer
        ],
        compiler_params=pltpu.CompilerParams(
            dimension_semantics=("arbitrary",),  # z_{t+1} depends on z_t: sequential
            vmem_limit_bytes=vmem_limit,
        ),
        cost_estimate=cost,
    )(z0, actions, w1p, b1, w2, b2, w3, b3)


# ---------------------------------------------------------------------------
# Params + pure-JAX references
# ---------------------------------------------------------------------------

def init_params(key, latent_dim=128, action_dim=4, hidden_dim=256):
    """Synthetic params. Weights stored [in, out] (transposed vs nn.Linear),
    cast to bf16, and W1 zero-padded along its input dim to a multiple of 128
    (256 for the default dims -> full MXU depth on v6e/v7x)."""
    d_in = latent_dim + action_dim
    padded_in = max(_round_up(d_in, 128), 128)
    k = jax.random.split(key, 6)
    scale = 0.05
    w1 = scale * jax.random.normal(k[0], (d_in, hidden_dim), jnp.float32)
    b1 = scale * jax.random.normal(k[1], (1, hidden_dim), jnp.float32)
    w2 = scale * jax.random.normal(k[2], (hidden_dim, hidden_dim), jnp.float32)
    b2 = scale * jax.random.normal(k[3], (1, hidden_dim), jnp.float32)
    w3 = scale * jax.random.normal(k[4], (hidden_dim, latent_dim), jnp.float32)
    b3 = scale * jax.random.normal(k[5], (1, latent_dim), jnp.float32)
    w1p = jnp.zeros((padded_in, hidden_dim), jnp.float32).at[:d_in].set(w1)
    bf16 = jnp.bfloat16
    return (w1p.astype(bf16), b1, w2.astype(bf16), b2, w3.astype(bf16), b3)


def reference_forward(z, action, params):
    """Pure-JAX reference with the same numerics (bf16 inputs, f32 accum)."""
    w1p, b1, w2, b2, w3, b3 = params
    d_in = z.shape[1] + action.shape[1]
    x = jnp.concatenate([z, action], axis=-1).astype(jnp.bfloat16)
    h1 = jnp.maximum(
        jnp.dot(x, w1p[:d_in], preferred_element_type=jnp.float32) + b1, 0.0)
    h2 = jnp.maximum(
        jnp.dot(h1.astype(jnp.bfloat16), w2,
                preferred_element_type=jnp.float32) + b2, 0.0)
    return jnp.dot(h2.astype(jnp.bfloat16), w3,
                   preferred_element_type=jnp.float32) + b3


def reference_rollout(z0, actions, params):
    def step(z, a):
        z_next = reference_forward(z, a, params)
        return z_next, z_next
    _, zs = jax.lax.scan(step, z0, actions)
    return zs


if __name__ == "__main__":
    latent_dim, action_dim, hidden_dim = 128, 4, 256
    batch = 256       # <= 512 -> single grid step, weights DMA'd once
    rollout_T = 4

    key = jax.random.PRNGKey(0)
    kz, ka, kp, kr = jax.random.split(key, 4)
    z = jax.random.normal(kz, (batch, latent_dim), jnp.float32)
    action = jax.random.normal(ka, (batch, action_dim), jnp.float32)
    actions_seq = jax.random.normal(kr, (rollout_T, batch, action_dim), jnp.float32)
    params = init_params(kp, latent_dim, action_dim, hidden_dim)

    # Single-step forward (matches DynamicsModel.forward).
    out = jax.block_until_ready(dynamics_model_forward(z, action, params))
    ref = reference_forward(z, action, params)
    assert out.shape == (batch, latent_dim)
    assert jnp.allclose(out, ref, atol=1e-2, rtol=1e-2), "single-step mismatch"

    # Multi-step rollout (time loop folded into the kernel grid).
    zs = jax.block_until_ready(dynamics_rollout(z, actions_seq, params))
    zs_ref = reference_rollout(z, actions_seq, params)
    assert zs.shape == (rollout_T, batch, latent_dim)
    assert jnp.allclose(zs, zs_ref, atol=2e-2, rtol=2e-2), "rollout mismatch"

    print("KERNEL_OK")
</pallas_src>

<mosaic_0001>
module attributes {stable_mosaic.version = 11 : i64} {
  func.func @kernel(%arg0: i32, %arg1: memref<256x128xf32, #tpu.memory_space<vmem>>, %arg2: memref<256x4xf32, #tpu.memory_space<vmem>>, %arg3: memref<256x256xbf16, #tpu.memory_space<vmem>>, %arg4: memref<1x256xf32, #tpu.memory_space<vmem>>, %arg5: memref<256x256xbf16, #tpu.memory_space<vmem>>, %arg6: memref<1x256xf32, #tpu.memory_space<vmem>>, %arg7: memref<256x128xbf16, #tpu.memory_space<vmem>>, %arg8: memref<1x128xf32, #tpu.memory_space<vmem>>, %arg9: memref<256x128xf32, #tpu.memory_space<vmem>>, %arg10: memref<256x256xbf16, #tpu.memory_space<vmem>>) attributes {dimension_semantics = [#tpu.dimension_semantics<arbitrary>], iteration_bounds = array<i64: 1>, scalar_prefetch = 0 : i64, scratch_operands = 1 : i64, tpu.core_type = #tpu.core_type<tc>, window_params = [{transform_indices = @transform_0, window_bounds = array<i64: 256, 128>}, {transform_indices = @transform_1, window_bounds = array<i64: 256, 4>}, {pipeline_mode = #tpu.pipeline_mode<synchronous>, transform_indices = @transform_2, window_bounds = array<i64: 256, 256>}, {pipeline_mode = #tpu.pipeline_mode<synchronous>, transform_indices = @transform_3, window_bounds = array<i64: 1, 256>}, {pipeline_mode = #tpu.pipeline_mode<synchronous>, transform_indices = @transform_4, window_bounds = array<i64: 256, 256>}, {pipeline_mode = #tpu.pipeline_mode<synchronous>, transform_indices = @transform_5, window_bounds = array<i64: 1, 256>}, {pipeline_mode = #tpu.pipeline_mode<synchronous>, transform_indices = @transform_6, window_bounds = array<i64: 256, 128>}, {pipeline_mode = #tpu.pipeline_mode<synchronous>, transform_indices = @transform_7, window_bounds = array<i64: 1, 128>}, {transform_indices = @transform_8, window_bounds = array<i64: 256, 128>}]} {
    %cst = arith.constant 0.000000e+00 : bf16
    %0 = vector.broadcast %cst : bf16 to vector<256x256xbf16>
    %c0 = arith.constant 0 : index
    %c0_0 = arith.constant 0 : index
    %1 = vector.load %arg10[%c0, %c0_0] : memref<256x256xbf16, #tpu.memory_space<vmem>>, vector<256x256xbf16>
    tpu.vector_store %arg10[%c0, %c0_0], %0 {strides = array<i32>} : memref<256x256xbf16, #tpu.memory_space<vmem>>, vector<256x256xbf16>,
    %c0_1 = arith.constant 0 : index
    %c0_2 = arith.constant 0 : index
    %2 = vector.load %arg1[%c0_1, %c0_2] : memref<256x128xf32, #tpu.memory_space<vmem>>, vector<256x128xf32>
    %3 = arith.truncf %2 : vector<256x128xf32> to vector<256x128xbf16>
    %c0_3 = arith.constant 0 : index
    %c0_4 = arith.constant 0 : index
    %4 = vector.load %arg10[%c0_3, %c0_4] : memref<256x256xbf16, #tpu.memory_space<vmem>>, vector<256x128xbf16>
    tpu.vector_store %arg10[%c0_3, %c0_4], %3 {strides = array<i32>} : memref<256x256xbf16, #tpu.memory_space<vmem>>, vector<256x128xbf16>,
    %c0_5 = arith.constant 0 : index
    %c0_6 = arith.constant 0 : index
    %5 = vector.load %arg2[%c0_5, %c0_6] : memref<256x4xf32, #tpu.memory_space<vmem>>, vector<256x4xf32>
    %6 = arith.truncf %5 : vector<256x4xf32> to vector<256x4xbf16>
    %c0_7 = arith.constant 0 : index
    %c128 = arith.constant 128 : index
    %7 = vector.load %arg10[%c0_7, %c128] : memref<256x256xbf16, #tpu.memory_space<vmem>>, vector<256x4xbf16>
    tpu.vector_store %arg10[%c0_7, %c128], %6 {strides = array<i32>} : memref<256x256xbf16, #tpu.memory_space<vmem>>, vector<256x4xbf16>,
    %c0_8 = arith.constant 0 : index
    %c0_9 = arith.constant 0 : index
    %8 = vector.load %arg10[%c0_8, %c0_9] : memref<256x256xbf16, #tpu.memory_space<vmem>>, vector<256x256xbf16>
    %c0_10 = arith.constant 0 : index
    %c0_11 = arith.constant 0 : index
    %9 = vector.load %arg3[%c0_10, %c0_11] : memref<256x256xbf16, #tpu.memory_space<vmem>>, vector<256x256xbf16>
    %cst_12 = arith.constant dense<0.000000e+00> : vector<256x256xf32>
    %10 = tpu.matmul %8, %9, %cst_12 {dimension_numbers = #tpu.dot_dimension_numbers<[1], [0], [0], [1], [0, 0, 1, 1], [], []>} : vector<256x256xbf16>, vector<256x256xbf16>, vector<256x256xf32> -> vector<256x256xf32>
    %c0_13 = arith.constant 0 : index
    %c0_14 = arith.constant 0 : index
    %11 = vector.load %arg4[%c0_13, %c0_14] : memref<1x256xf32, #tpu.memory_space<vmem>>, vector<1x256xf32>
    %12 = vector.broadcast %11 : vector<1x256xf32> to vector<256x256xf32>
    %13 = arith.addf %10, %12 : vector<256x256xf32>
    %cst_15 = arith.constant 0.000000e+00 : f32
    %14 = vector.broadcast %cst_15 : f32 to vector<256x256xf32>
    %15 = arith.maximumf %13, %14 : vector<256x256xf32>
    %16 = arith.truncf %15 : vector<256x256xf32> to vector<256x256xbf16>
    %c0_16 = arith.constant 0 : index
    %c0_17 = arith.constant 0 : index
    %17 = vector.load %arg5[%c0_16, %c0_17] : memref<256x256xbf16, #tpu.memory_space<vmem>>, vector<256x256xbf16>
    %cst_18 = arith.constant dense<0.000000e+00> : vector<256x256xf32>
    %18 = tpu.matmul %16, %17, %cst_18 {dimension_numbers = #tpu.dot_dimension_numbers<[1], [0], [0], [1], [0, 0, 1, 1], [], []>} : vector<256x256xbf16>, vector<256x256xbf16>, vector<256x256xf32> -> vector<256x256xf32>
    %c0_19 = arith.constant 0 : index
    %c0_20 = arith.constant 0 : index
    %19 = vector.load %arg6[%c0_19, %c0_20] : memref<1x256xf32, #tpu.memory_space<vmem>>, vector<1x256xf32>
    %20 = vector.broadcast %19 : vector<1x256xf32> to vector<256x256xf32>
    %21 = arith.addf %18, %20 : vector<256x256xf32>
    %cst_21 = arith.constant 0.000000e+00 : f32
    %22 = vector.broadcast %cst_21 : f32 to vector<256x256xf32>
    %23 = arith.maximumf %21, %22 : vector<256x256xf32>
    %24 = arith.truncf %23 : vector<256x256xf32> to vector<256x256xbf16>
    %c0_22 = arith.constant 0 : index
    %c0_23 = arith.constant 0 : index
    %25 = vector.load %arg7[%c0_22, %c0_23] : memref<256x128xbf16, #tpu.memory_space<vmem>>, vector<256x128xbf16>
    %cst_24 = arith.constant dense<0.000000e+00> : vector<256x128xf32>
    %26 = tpu.matmul %24, %25, %cst_24 {dimension_numbers = #tpu.dot_dimension_numbers<[1], [0], [0], [1], [0, 0, 1, 1], [], []>} : vector<256x256xbf16>, vector<256x128xbf16>, vector<256x128xf32> -> vector<256x128xf32>
    %c0_25 = arith.constant 0 : index
    %c0_26 = arith.constant 0 : index
    %27 = vector.load %arg8[%c0_25, %c0_26] : memref<1x128xf32, #tpu.memory_space<vmem>>, vector<1x128xf32>
    %28 = vector.broadcast %27 : vector<1x128xf32> to vector<256x128xf32>
    %29 = arith.addf %26, %28 : vector<256x128xf32>
    %c0_27 = arith.constant 0 : index
    %c0_28 = arith.constant 0 : index
    %30 = vector.load %arg9[%c0_27, %c0_28] : memref<256x128xf32, #tpu.memory_space<vmem>>, vector<256x128xf32>
    tpu.vector_store %arg9[%c0_27, %c0_28], %29 {strides = array<i32>} : memref<256x128xf32, #tpu.memory_space<vmem>>, vector<256x128xf32>,
    return
  }
  func.func @transform_0(%arg0: i32) -> (i32, i32) {
    %c0_i32 = arith.constant 0 : i32
    %c0_i32_0 = arith.constant 0 : i32
    return %arg0, %c0_i32 : i32, i32
  }
  func.func @transform_1(%arg0: i32) -> (i32, i32) {
    %c0_i32 = arith.constant 0 : i32
    %c0_i32_0 = arith.constant 0 : i32
    return %arg0, %c0_i32 : i32, i32
  }
  func.func @transform_2(%arg0: i32) -> (i32, i32) {
    %c0_i32 = arith.constant 0 : i32
    %c0_i32_0 = arith.constant 0 : i32
    %c0_i32_1 = arith.constant 0 : i32
    return %c0_i32, %c0_i32_0 : i32, i32
  }
  func.func @transform_3(%arg0: i32) -> (i32, i32) {
    %c0_i32 = arith.constant 0 : i32
    %c0_i32_0 = arith.constant 0 : i32
    %c0_i32_1 = arith.constant 0 : i32
    return %c0_i32, %c0_i32_0 : i32, i32
  }
  func.func @transform_4(%arg0: i32) -> (i32, i32) {
    %c0_i32 = arith.constant 0 : i32
    %c0_i32_0 = arith.constant 0 : i32
    %c0_i32_1 = arith.constant 0 : i32
    return %c0_i32, %c0_i32_0 : i32, i32
  }
  func.func @transform_5(%arg0: i32) -> (i32, i32) {
    %c0_i32 = arith.constant 0 : i32
    %c0_i32_0 = arith.constant 0 : i32
    %c0_i32_1 = arith.constant 0 : i32
    return %c0_i32, %c0_i32_0 : i32, i32
  }
  func.func @transform_6(%arg0: i32) -> (i32, i32) {
    %c0_i32 = arith.constant 0 : i32
    %c0_i32_0 = arith.constant 0 : i32
    %c0_i32_1 = arith.constant 0 : i32
    return %c0_i32, %c0_i32_0 : i32, i32
  }
  func.func @transform_7(%arg0: i32) -> (i32, i32) {
    %c0_i32 = arith.constant 0 : i32
    %c0_i32_0 = arith.constant 0 : i32
    %c0_i32_1 = arith.constant 0 : i32
    return %c0_i32, %c0_i32_0 : i32, i32
  }
  func.func @transform_8(%arg0: i32) -> (i32, i32) {
    %c0_i32 = arith.constant 0 : i32
    %c0_i32_0 = arith.constant 0 : i32
    return %arg0, %c0_i32 : i32, i32
  }
}

</mosaic_0001>

<llo_original>
// kernel: tpu_custom_call.1
$region0: #{tpu_custom_call.1}
  #allocation0 [shape = 'u32[]', space=smem, size = 0x4, offset = 0x4, fixed_abs, tag = 'smem constant byte address 0x4 - core index']
  #allocation1 [shape = 'u32[144,128]{1,0:T(1,128)}', space=vmem, size = 0x12000, scoped, tag = 'internal scratch']
  #allocation2 [shape = 'bf16[256,256]{1,0:T(8,128)(2,1)}', space=vmem, size = 0x20000, scoped, tag = 'scratch operand']
  %s0 = inlined_call_operand.vmem [shape: f32[256,128], index: 0, kind: input, shape index: {}]
  %s1 = inlined_call_operand.vmem [shape: f32[256,4], index: 1, kind: input, shape index: {}]
  %s2 = inlined_call_operand.hbm [shape: bf16[256,256], index: 2, kind: input, shape index: {}]
  %s3 = inlined_call_operand.vmem [shape: f32[1,256], index: 3, kind: input, shape index: {}]
  %s4 = inlined_call_operand.hbm [shape: bf16[256,256], index: 4, kind: input, shape index: {}]
  %s5 = inlined_call_operand.vmem [shape: f32[1,256], index: 5, kind: input, shape index: {}]
  %s6 = inlined_call_operand.hbm [shape: bf16[256,128], index: 6, kind: input, shape index: {}]
  %s7 = inlined_call_operand.vmem [shape: f32[1,128], index: 7, kind: input, shape index: {}]
  %s8 = inlined_call_operand.hbm [shape: f32[256,128], index: 8, kind: output, shape index: {}]
  %s9 = sld [smem:[#allocation0]]
  $region54: #{tpu_custom_call.1} parent=0
    _
  %s11 = ssub.s32 1, %s9
  %s12 = scalar_select 0, %s11, %s9
  $region1: #{tpu_custom_call.1} parent=0
    #allocation3 [shape = 'u8[131072]{0}', space=vmem, size = 0x20000, scoped, tag = 'input window, operand 2, single buffered']
    #allocation4 [shape = 's32[1]{0}', space=sflag, size = 0x4, scoped, tag = 'scoped memory for tpu_custom_call.1']
    #allocation5 [shape = 's32[1]{0}', space=sflag, size = 0x4, scoped, tag = 'scoped memory for tpu_custom_call.1']
    #allocation6 [shape = 'u8[131072]{0}', space=vmem, size = 0x20000, scoped, tag = 'input window, operand 4, single buffered']
    #allocation7 [shape = 's32[1]{0}', space=sflag, size = 0x4, scoped, tag = 'scoped memory for tpu_custom_call.1']
    #allocation8 [shape = 'u8[65536]{0}', space=vmem, size = 0x10000, scoped, tag = 'input window, operand 6, single buffered']
    #allocation9 [shape = 'u8[131072]{0}', space=vmem, size = 0x20000, scoped, tag = 'output window, operand 0, single buffered']
    %13 = vsyncpa [#allocation4], 0
    %14 = vsyncpa [#allocation7], 0
    %15 = vsyncpa [#allocation5], 0
    // Predicated region
    $region2: #{tpu_custom_call.1} parent=1 // pred_check
      _
    $region3: #{tpu_custom_call.1} parent=1 // pred_check_branch
      %17 = sbr.rel (0) target = $region5
    $region4: #{tpu_custom_call.1} parent=1 // pred_region
      _
    $region5: #{tpu_custom_call.1} parent=1 // pred_fallthru
      _
    // Predicated region
    $region6: #{tpu_custom_call.1} parent=1 // pred_check
      _
    $region7: #{tpu_custom_call.1} parent=1 // pred_check_branch
      %19 = sbr.rel (0) target = $region9
    $region8: #{tpu_custom_call.1} parent=1 // pred_region
      _
    $region9: #{tpu_custom_call.1} parent=1 // pred_fallthru
      _
    // Predicated region
    $region10: #{tpu_custom_call.1} parent=1 // pred_check
      _
    $region11: #{tpu_custom_call.1} parent=1 // pred_check_branch
      %21 = sbr.rel (0) target = $region13
    $region12: #{tpu_custom_call.1} parent=1 // pred_region
      %s23 = ssub.s32 4096, 4096
      %24 = vsyncadd [#allocation4], %s23
      %s25 = sshll.u32 [#allocation3], 4
      %s26 = int_to_ptr.vmem [resolvable:$true] %s25
      %31 = dma.hbm_to_vmem [thread:$0]  %s2, 4096, %s26, [#allocation4], 128, 128, 8
    $region13: #{tpu_custom_call.1} parent=1 // pred_fallthru
      _
    // Predicated region
    $region14: #{tpu_custom_call.1} parent=1 // pred_check
      _
    $region15: #{tpu_custom_call.1} parent=1 // pred_check_branch
      %33 = sbr.rel (0) target = $region17
    $region16: #{tpu_custom_call.1} parent=1 // pred_region
      _
    $region17: #{tpu_custom_call.1} parent=1 // pred_fallthru
      _
    // Predicated region
    $region18: #{tpu_custom_call.1} parent=1 // pred_check
      _
    $region19: #{tpu_custom_call.1} parent=1 // pred_check_branch
      %35 = sbr.rel (0) target = $region21
    $region20: #{tpu_custom_call.1} parent=1 // pred_region
      %s37 = ssub.s32 4096, 4096
      %38 = vsyncadd [#allocation7], %s37
      %s39 = sshll.u32 [#allocation6], 4
      %s40 = int_to_ptr.vmem [resolvable:$true] %s39
      %45 = dma.hbm_to_vmem [thread:$0]  %s4, 4096, %s40, [#allocation7], 128, 128, 8
    $region21: #{tpu_custom_call.1} parent=1 // pred_fallthru
      _
    // Predicated region
    $region22: #{tpu_custom_call.1} parent=1 // pred_check
      _
    $region23: #{tpu_custom_call.1} parent=1 // pred_check_branch
      %47 = sbr.rel (0) target = $region25
    $region24: #{tpu_custom_call.1} parent=1 // pred_region
      _
    $region25: #{tpu_custom_call.1} parent=1 // pred_fallthru
      _
    // Predicated region
    $region26: #{tpu_custom_call.1} parent=1 // pred_check
      _
    $region27: #{tpu_custom_call.1} parent=1 // pred_check_branch
      %49 = sbr.rel (0) target = $region29
    $region28: #{tpu_custom_call.1} parent=1 // pred_region
      %s51 = ssub.s32 2048, 2048
      %52 = vsyncadd [#allocation7], %s51
      %s53 = sshll.u32 [#allocation8], 4
      %s54 = int_to_ptr.vmem [resolvable:$true] %s53
      %59 = dma.hbm_to_vmem [thread:$0]  %s6, 2048, %s54, [#allocation7], 64, 64, 4
    $region29: #{tpu_custom_call.1} parent=1 // pred_fallthru
      _
    // Predicated region
    $region30: #{tpu_custom_call.1} parent=1 // pred_check
      _
    $region31: #{tpu_custom_call.1} parent=1 // pred_check_branch
      %61 = sbr.rel (0) target = $region33
    $region32: #{tpu_custom_call.1} parent=1 // pred_region
      _
    $region33: #{tpu_custom_call.1} parent=1 // pred_fallthru
      _
    // Predicated region
    $region34: #{tpu_custom_call.1} parent=1 // pred_check
      _
    $region35: #{tpu_custom_call.1} parent=1 // pred_check_branch
      %63 = sbr.rel (0) target = $region37
    $region36: #{tpu_custom_call.1} parent=1 // pred_region
      %64 = dma.done [#allocation4], 4096
    $region37: #{tpu_custom_call.1} parent=1 // pred_fallthru
      _
    // Predicated region
    $region38: #{tpu_custom_call.1} parent=1 // pred_check
      _
    $region39: #{tpu_custom_call.1} parent=1 // pred_check_branch
      %66 = sbr.rel (0) target = $region41
    $region40: #{tpu_custom_call.1} parent=1 // pred_region
      %67 = dma.done [#allocation7], 4096
    $region41: #{tpu_custom_call.1} parent=1 // pred_fallthru
      _
    // Predicated region
    $region42: #{tpu_custom_call.1} parent=1 // pred_check
      _
    $region43: #{tpu_custom_call.1} parent=1 // pred_check_branch
      %69 = sbr.rel (0) target = $region45
    $region44: #{tpu_custom_call.1} parent=1 // pred_region
      %70 = dma.done [#allocation7], 2048
    $region45: #{tpu_custom_call.1} parent=1 // pred_fallthru
      _
    %72 = vst [vmem:[#allocation2] sm:$0xff] 0
    %73 = vst [vmem:[#allocation2 + $0x8] sm:$0xff] 0
    %74 = vst [vmem:[#allocation2 + $0x10] sm:$0xff] 0
    %75 = vst [vmem:[#allocation2 + $0x18] sm:$0xff] 0
    %76 = vst [vmem:[#allocation2 + $0x20] sm:$0xff] 0
    %77 = vst [vmem:[#allocation2 + $0x28] sm:$0xff] 0
    %78 = vst [vmem:[#allocation2 + $0x30] sm:$0xff] 0
    %79 = vst [vmem:[#allocation2 + $0x38] sm:$0xff] 0
    %80 = vst [vmem:[#allocation2 + $0x40] sm:$0xff] 0
    %81 = vst [vmem:[#allocation2 + $0x48] sm:$0xff] 0
    %82 = vst [vmem:[#allocation2 + $0x50] sm:$0xff] 0
    %83 = vst [vmem:[#allocation2 + $0x58] sm:$0xff] 0
    %84 = vst [vmem:[#allocation2 + $0x60] sm:$0xff] 0
    %85 = vst [vmem:[#allocation2 + $0x68] sm:$0xff] 0
    %86 = vst [vmem:[#allocation2 + $0x70] sm:$0xff] 0
    %87 = vst [vmem:[#allocation2 + $0x78] sm:$0xff] 0
    %88 = vst [vmem:[#allocation2 + $0x80] sm:$0xff] 0
    %89 = vst [vmem:[#allocation2 + $0x88] sm:$0xff] 0
    %90 = vst [vmem:[#allocation2 + $0x90] sm:$0xff] 0
    %91 = vst [vmem:[#allocation2 + $0x98] sm:$0xff] 0
    %92 = vst [vmem:[#allocation2 + $0xa0] sm:$0xff] 0
    %93 = vst [vmem:[#allocation2 + $0xa8] sm:$0xff] 0
    %94 = vst [vmem:[#allocation2 + $0xb0] sm:$0xff] 0
    %95 = vst [vmem:[#allocation2 + $0xb8] sm:$0xff] 0
    %96 = vst [vmem:[#allocation2 + $0xc0] sm:$0xff] 0
    %97 = vst [vmem:[#allocation2 + $0xc8] sm:$0xff] 0
    %98 = vst [vmem:[#allocation2 + $0xd0] sm:$0xff] 0
    %99 = vst [vmem:[#allocation2 + $0xd8] sm:$0xff] 0
    %100 = vst [vmem:[#allocation2 + $0xe0] sm:$0xff] 0
    %101 = vst [vmem:[#allocation2 + $0xe8] sm:$0xff] 0
    %102 = vst [vmem:[#allocation2 + $0xf0] sm:$0xff] 0
    %103 = vst [vmem:[#allocation2 + $0xf8] sm:$0xff] 0
    %v104 = vld [vmem:[%s0] sm:$0xff]
    %v105 = vld [vmem:[%s0 + $0x8] sm:$0xff]
    %v106 = vld [vmem:[%s0 + $0x10] sm:$0xff]
    %v107 = vld [vmem:[%s0 + $0x18] sm:$0xff]
    %v108 = vld [vmem:[%s0 + $0x20] sm:$0xff]
    %v109 = vld [vmem:[%s0 + $0x28] sm:$0xff]
    %v110 = vld [vmem:[%s0 + $0x30] sm:$0xff]
    %v111 = vld [vmem:[%s0 + $0x38] sm:$0xff]
    %v112 = vld [vmem:[%s0 + $0x40] sm:$0xff]
    %v113 = vld [vmem:[%s0 + $0x48] sm:$0xff]
    %v114 = vld [vmem:[%s0 + $0x50] sm:$0xff]
    %v115 = vld [vmem:[%s0 + $0x58] sm:$0xff]
    %v116 = vld [vmem:[%s0 + $0x60] sm:$0xff]
    %v117 = vld [vmem:[%s0 + $0x68] sm:$0xff]
    %v118 = vld [vmem:[%s0 + $0x70] sm:$0xff]
    %v119 = vld [vmem:[%s0 + $0x78] sm:$0xff]
    %v120 = vld [vmem:[%s0 + $0x80] sm:$0xff]
    %v121 = vld [vmem:[%s0 + $0x88] sm:$0xff]
    %v122 = vld [vmem:[%s0 + $0x90] sm:$0xff]
    %v123 = vld [vmem:[%s0 + $0x98] sm:$0xff]
    %v124 = vld [vmem:[%s0 + $0xa0] sm:$0xff]
    %v125 = vld [vmem:[%s0 + $0xa8] sm:$0xff]
    %v126 = vld [vmem:[%s0 + $0xb0] sm:$0xff]
    %v127 = vld [vmem:[%s0 + $0xb8] sm:$0xff]
    %v128 = vld [vmem:[%s0 + $0xc0] sm:$0xff]
    %v129 = vld [vmem:[%s0 + $0xc8] sm:$0xff]
    %v130 = vld [vmem:[%s0 + $0xd0] sm:$0xff]
    %v131 = vld [vmem:[%s0 + $0xd8] sm:$0xff]
    %v132 = vld [vmem:[%s0 + $0xe0] sm:$0xff]
    %v133 = vld [vmem:[%s0 + $0xe8] sm:$0xff]
    %v134 = vld [vmem:[%s0 + $0xf0] sm:$0xff]
    %v135 = vld [vmem:[%s0 + $0xf8] sm:$0xff]
    %v136 = vpack.c.bf16 %v105, %v104
    %v137 = vpack.c.bf16 %v107, %v106
    %v138 = vpack.c.bf16 %v109, %v108
    %v139 = vpack.c.bf16 %v111, %v110
    %v140 = vpack.c.bf16 %v113, %v112
    %v141 = vpack.c.bf16 %v115, %v114
    %v142 = vpack.c.bf16 %v117, %v116
    %v143 = vpack.c.bf16 %v119, %v118
    %v144 = vpack.c.bf16 %v121, %v120
    %v145 = vpack.c.bf16 %v123, %v122
    %v146 = vpack.c.bf16 %v125, %v124
    %v147 = vpack.c.bf16 %v127, %v126
    %v148 = vpack.c.bf16 %v129, %v128
    %v149 = vpack.c.bf16 %v131, %v130
    %v150 = vpack.c.bf16 %v133, %v132
    %v151 = vpack.c.bf16 %v135, %v134
    %v168 = vunpack.c.l.b16 %v136
    %v169 = vunpack.c.h.b16 %v136
    %v170 = vunpack.c.l.b16 %v137
    %v171 = vunpack.c.h.b16 %v137
    %v172 = vunpack.c.l.b16 %v138
    %v173 = vunpack.c.h.b16 %v138
    %v174 = vunpack.c.l.b16 %v139
    %v175 = vunpack.c.h.b16 %v139
    %v176 = vunpack.c.l.b16 %v140
    %v177 = vunpack.c.h.b16 %v140
    %v178 = vunpack.c.l.b16 %v141
    %v179 = vunpack.c.h.b16 %v141
    %v180 = vunpack.c.l.b16 %v142
    %v181 = vunpack.c.h.b16 %v142
    %v182 = vunpack.c.l.b16 %v143
    %v183 = vunpack.c.h.b16 %v143
    %v184 = vunpack.c.l.b16 %v144
    %v185 = vunpack.c.h.b16 %v144
    %v186 = vunpack.c.l.b16 %v145
    %v187 = vunpack.c.h.b16 %v145
    %v188 = vunpack.c.l.b16 %v146
    %v189 = vunpack.c.h.b16 %v146
    %v190 = vunpack.c.l.b16 %v147
    %v191 = vunpack.c.h.b16 %v147
    %v192 = vunpack.c.l.b16 %v148
    %v193 = vunpack.c.h.b16 %v148
    %v194 = vunpack.c.l.b16 %v149
    %v195 = vunpack.c.h.b16 %v149
    %v196 = vunpack.c.l.b16 %v150
    %v197 = vunpack.c.h.b16 %v150
    %v198 = vunpack.c.l.b16 %v151
    %v199 = vunpack.c.h.b16 %v151
    %v200 = vpack.c.b16 %v168, %v168
    %v201 = vpack.c.b16 %v169, %v169
    %v202 = vpack.c.b16 %v170, %v170
    %v203 = vpack.c.b16 %v171, %v171
    %v204 = vpack.c.b16 %v172, %v172
    %v205 = vpack.c.b16 %v173, %v173
    %v206 = vpack.c.b16 %v174, %v174
    %v207 = vpack.c.b16 %v175, %v175
    %v208 = vpack.c.b16 %v176, %v176
    %v209 = vpack.c.b16 %v177, %v177
    %v210 = vpack.c.b16 %v178, %v178
    %v211 = vpack.c.b16 %v179, %v179
    %v212 = vpack.c.b16 %v180, %v180
    %v213 = vpack.c.b16 %v181, %v181
    %v214 = vpack.c.b16 %v182, %v182
    %v215 = vpack.c.b16 %v183, %v183
    %v216 = vpack.c.b16 %v184, %v184
    %v217 = vpack.c.b16 %v185, %v185
    %v218 = vpack.c.b16 %v186, %v186
    %v219 = vpack.c.b16 %v187, %v187
    %v220 = vpack.c.b16 %v188, %v188
    %v221 = vpack.c.b16 %v189, %v189
    %v222 = vpack.c.b16 %v190, %v190
    %v223 = vpack.c.b16 %v191, %v191
    %v224 = vpack.c.b16 %v192, %v192
    %v225 = vpack.c.b16 %v193, %v193
    %v226 = vpack.c.b16 %v194, %v194
    %v227 = vpack.c.b16 %v195, %v195
    %v228 = vpack.c.b16 %v196, %v196
    %v229 = vpack.c.b16 %v197, %v197
    %v230 = vpack.c.b16 %v198, %v198
    %v231 = vpack.c.b16 %v199, %v199
    %264 = vst [vmem:[#allocation2] sm:$0xf] %v200
    %265 = vst [vmem:[#allocation2 + $0x8] sm:$0xf] %v201
    %266 = vst [vmem:[#allocation2 + $0x10] sm:$0xf] %v202
    %267 = vst [vmem:[#allocation2 + $0x18] sm:$0xf] %v203
    %268 = vst [vmem:[#allocation2 + $0x20] sm:$0xf] %v204
    %269 = vst [vmem:[#allocation2 + $0x28] sm:$0xf] %v205
    %270 = vst [vmem:[#allocation2 + $0x30] sm:$0xf] %v206
    %271 = vst [vmem:[#allocation2 + $0x38] sm:$0xf] %v207
    %272 = vst [vmem:[#allocation2 + $0x40] sm:$0xf] %v208
    %273 = vst [vmem:[#allocation2 + $0x48] sm:$0xf] %v209
    %274 = vst [vmem:[#allocation2 + $0x50] sm:$0xf] %v210
    %275 = vst [vmem:[#allocation2 + $0x58] sm:$0xf] %v211
    %276 = vst [vmem:[#allocation2 + $0x60] sm:$0xf] %v212
    %277 = vst [vmem:[#allocation2 + $0x68] sm:$0xf] %v213
    %278 = vst [vmem:[#allocation2 + $0x70] sm:$0xf] %v214
    %279 = vst [vmem:[#allocation2 + $0x78] sm:$0xf] %v215
    %280 = vst [vmem:[#allocation2 + $0x80] sm:$0xf] %v216
    %281 = vst [vmem:[#allocation2 + $0x88] sm:$0xf] %v217
    %282 = vst [vmem:[#allocation2 + $0x90] sm:$0xf] %v218
    %283 = vst [vmem:[#allocation2 + $0x98] sm:$0xf] %v219
    %284 = vst [vmem:[#allocation2 + $0xa0] sm:$0xf] %v220
    %285 = vst [vmem:[#allocation2 + $0xa8] sm:$0xf] %v221
    %286 = vst [vmem:[#allocation2 + $0xb0] sm:$0xf] %v222
    %287 = vst [vmem:[#allocation2 + $0xb8] sm:$0xf] %v223
    %288 = vst [vmem:[#allocation2 + $0xc0] sm:$0xf] %v224
    %289 = vst [vmem:[#allocation2 + $0xc8] sm:$0xf] %v225
    %290 = vst [vmem:[#allocation2 + $0xd0] sm:$0xf] %v226
    %291 = vst [vmem:[#allocation2 + $0xd8] sm:$0xf] %v227
    %292 = vst [vmem:[#allocation2 + $0xe0] sm:$0xf] %v228
    %293 = vst [vmem:[#allocation2 + $0xe8] sm:$0xf] %v229
    %294 = vst [vmem:[#allocation2 + $0xf0] sm:$0xf] %v230
    %295 = vst [vmem:[#allocation2 + $0xf8] sm:$0xf] %v231
    %v296 = vld [vmem:[%s1] sm:$0xff]
    %v297 = vld [vmem:[%s1 + $0x8] sm:$0xff]
    %v298 = vld [vmem:[%s1 + $0x10] sm:$0xff]
    %v299 = vld [vmem:[%s1 + $0x18] sm:$0xff]
    %v300 = vld [vmem:[%s1 + $0x20] sm:$0xff]
    %v301 = vld [vmem:[%s1 + $0x28] sm:$0xff]
    %v302 = vld [vmem:[%s1 + $0x30] sm:$0xff]
    %v303 = vld [vmem:[%s1 + $0x38] sm:$0xff]
    %v304 = vld [vmem:[%s1 + $0x40] sm:$0xff]
    %v305 = vld [vmem:[%s1 + $0x48] sm:$0xff]
    %v306 = vld [vmem:[%s1 + $0x50] sm:$0xff]
    %v307 = vld [vmem:[%s1 + $0x58] sm:$0xff]
    %v308 = vld [vmem:[%s1 + $0x60] sm:$0xff]
    %v309 = vld [vmem:[%s1 + $0x68] sm:$0xff]
    %v310 = vld [vmem:[%s1 + $0x70] sm:$0xff]
    %v311 = vld [vmem:[%s1 + $0x78] sm:$0xff]
    %v312 = vld [vmem:[%s1 + $0x80] sm:$0xff]
    %v313 = vld [vmem:[%s1 + $0x88] sm:$0xff]
    %v314 = vld [vmem:[%s1 + $0x90] sm:$0xff]
    %v315 = vld [vmem:[%s1 + $0x98] sm:$0xff]
    %v316 = vld [vmem:[%s1 + $0xa0] sm:$0xff]
    %v317 = vld [vmem:[%s1 + $0xa8] sm:$0xff]
    %v318 = vld [vmem:[%s1 + $0xb0] sm:$0xff]
    %v319 = vld [vmem:[%s1 + $0xb8] sm:$0xff]
    %v320 = vld [vmem:[%s1 + $0xc0] sm:$0xff]
    %v321 = vld [vmem:[%s1 + $0xc8] sm:$0xff]
    %v322 = vld [vmem:[%s1 + $0xd0] sm:$0xff]
    %v323 = vld [vmem:[%s1 + $0xd8] sm:$0xff]
    %v324 = vld [vmem:[%s1 + $0xe0] sm:$0xff]
    %v325 = vld [vmem:[%s1 + $0xe8] sm:$0xff]
    %v326 = vld [vmem:[%s1 + $0xf0] sm:$0xff]
    %v327 = vld [vmem:[%s1 + $0xf8] sm:$0xff]
    %v328 = vpack.c.bf16 %v297, %v296
    %v329 = vpack.c.bf16 %v299, %v298
    %v330 = vpack.c.bf16 %v301, %v300
    %v331 = vpack.c.bf16 %v303, %v302
    %v332 = vpack.c.bf16 %v305, %v304
    %v333 = vpack.c.bf16 %v307, %v306
    %v334 = vpack.c.bf16 %v309, %v308
    %v335 = vpack.c.bf16 %v311, %v310
    %v336 = vpack.c.bf16 %v313, %v312
    %v337 = vpack.c.bf16 %v315, %v314
    %v338 = vpack.c.bf16 %v317, %v316
    %v339 = vpack.c.bf16 %v319, %v318
    %v340 = vpack.c.bf16 %v321, %v320
    %v341 = vpack.c.bf16 %v323, %v322
    %v342 = vpack.c.bf16 %v325, %v324
    %v343 = vpack.c.bf16 %v327, %v326
    %v360 = vunpack.c.l.b16 %v328
    %v361 = vunpack.c.h.b16 %v328
    %v362 = vunpack.c.l.b16 %v329
    %v363 = vunpack.c.h.b16 %v329
    %v364 = vunpack.c.l.b16 %v330
    %v365 = vunpack.c.h.b16 %v330
    %v366 = vunpack.c.l.b16 %v331
    %v367 = vunpack.c.h.b16 %v331
    %v368 = vunpack.c.l.b16 %v332
    %v369 = vunpack.c.h.b16 %v332
    %v370 = vunpack.c.l.b16 %v333
    %v371 = vunpack.c.h.b16 %v333
    %v372 = vunpack.c.l.b16 %v334
    %v373 = vunpack.c.h.b16 %v334
    %v374 = vunpack.c.l.b16 %v335
    %v375 = vunpack.c.h.b16 %v335
    %v376 = vunpack.c.l.b16 %v336
    %v377 = vunpack.c.h.b16 %v336
    %v378 = vunpack.c.l.b16 %v337
    %v379 = vunpack.c.h.b16 %v337
    %v380 = vunpack.c.l.b16 %v338
    %v381 = vunpack.c.h.b16 %v338
    %v382 = vunpack.c.l.b16 %v339
    %v383 = vunpack.c.h.b16 %v339
    %v384 = vunpack.c.l.b16 %v340
    %v385 = vunpack.c.h.b16 %v340
    %v386 = vunpack.c.l.b16 %v341
    %v387 = vunpack.c.h.b16 %v341
    %v388 = vunpack.c.l.b16 %v342
    %v389 = vunpack.c.h.b16 %v342
    %v390 = vunpack.c.l.b16 %v343
    %v391 = vunpack.c.h.b16 %v343
    %v392 = vpack.c.b16 %v360, %v360
    %v393 = vpack.c.b16 %v361, %v361
    %v394 = vpack.c.b16 %v362, %v362
    %v395 = vpack.c.b16 %v363, %v363
    %v396 = vpack.c.b16 %v364, %v364
    %v397 = vpack.c.b16 %v365, %v365
    %v398 = vpack.c.b16 %v366, %v366
    %v399 = vpack.c.b16 %v367, %v367
    %v400 = vpack.c.b16 %v368, %v368
    %v401 = vpack.c.b16 %v369, %v369
    %v402 = vpack.c.b16 %v370, %v370
    %v403 = vpack.c.b16 %v371, %v371
    %v404 = vpack.c.b16 %v372, %v372
    %v405 = vpack.c.b16 %v373, %v373
    %v406 = vpack.c.b16 %v374, %v374
    %v407 = vpack.c.b16 %v375, %v375
    %v408 = vpack.c.b16 %v376, %v376
    %v409 = vpack.c.b16 %v377, %v377
    %v410 = vpack.c.b16 %v378, %v378
    %v411 = vpack.c.b16 %v379, %v379
    %v412 = vpack.c.b16 %v380, %v380
    %v413 = vpack.c.b16 %v381, %v381
    %v414 = vpack.c.b16 %v382, %v382
    %v415 = vpack.c.b16 %v383, %v383
    %v416 = vpack.c.b16 %v384, %v384
    %v417 = vpack.c.b16 %v385, %v385
    %v418 = vpack.c.b16 %v386, %v386
    %v419 = vpack.c.b16 %v387, %v387
    %v420 = vpack.c.b16 %v388, %v388
    %v421 = vpack.c.b16 %v389, %v389
    %v422 = vpack.c.b16 %v390, %v390
    %v423 = vpack.c.b16 %v391, %v391
    %vm456 = vcmask 27648
    %457 = vst.msk [vmem:[#allocation2 + $0x4] sm:$0xf] %vm456, %v392
    %458 = vst.msk [vmem:[#allocation2 + $0xc] sm:$0xf] %vm456, %v393
    %459 = vst.msk [vmem:[#allocation2 + $0x14] sm:$0xf] %vm456, %v394
    %460 = vst.msk [vmem:[#allocation2 + $0x1c] sm:$0xf] %vm456, %v395
    %461 = vst.msk [vmem:[#allocation2 + $0x24] sm:$0xf] %vm456, %v396
    %462 = vst.msk [vmem:[#allocation2 + $0x2c] sm:$0xf] %vm456, %v397
    %463 = vst.msk [vmem:[#allocation2 + $0x34] sm:$0xf] %vm456, %v398
    %464 = vst.msk [vmem:[#allocation2 + $0x3c] sm:$0xf] %vm456, %v399
    %465 = vst.msk [vmem:[#allocation2 + $0x44] sm:$0xf] %vm456, %v400
    %466 = vst.msk [vmem:[#allocation2 + $0x4c] sm:$0xf] %vm456, %v401
    %467 = vst.msk [vmem:[#allocation2 + $0x54] sm:$0xf] %vm456, %v402
    %468 = vst.msk [vmem:[#allocation2 + $0x5c] sm:$0xf] %vm456, %v403
    %469 = vst.msk [vmem:[#allocation2 + $0x64] sm:$0xf] %vm456, %v404
    %470 = vst.msk [vmem:[#allocation2 + $0x6c] sm:$0xf] %vm456, %v405
    %471 = vst.msk [vmem:[#allocation2 + $0x74] sm:$0xf] %vm456, %v406
    %472 = vst.msk [vmem:[#allocation2 + $0x7c] sm:$0xf] %vm456, %v407
    %473 = vst.msk [vmem:[#allocation2 + $0x84] sm:$0xf] %vm456, %v408
    %474 = vst.msk [vmem:[#allocation2 + $0x8c] sm:$0xf] %vm456, %v409
    %475 = vst.msk [vmem:[#allocation2 + $0x94] sm:$0xf] %vm456, %v410
    %476 = vst.msk [vmem:[#allocation2 + $0x9c] sm:$0xf] %vm456, %v411
    %477 = vst.msk [vmem:[#allocation2 + $0xa4] sm:$0xf] %vm456, %v412
    %478 = vst.msk [vmem:[#allocation2 + $0xac] sm:$0xf] %vm456, %v413
    %479 = vst.msk [vmem:[#allocation2 + $0xb4] sm:$0xf] %vm456, %v414
    %480 = vst.msk [vmem:[#allocation2 + $0xbc] sm:$0xf] %vm456, %v415
    %481 = vst.msk [vmem:[#allocation2 + $0xc4] sm:$0xf] %vm456, %v416
    %482 = vst.msk [vmem:[#allocation2 + $0xcc] sm:$0xf] %vm456, %v417
    %483 = vst.msk [vmem:[#allocation2 + $0xd4] sm:$0xf] %vm456, %v418
    %484 = vst.msk [vmem:[#allocation2 + $0xdc] sm:$0xf] %vm456, %v419
    %485 = vst.msk [vmem:[#allocation2 + $0xe4] sm:$0xf] %vm456, %v420
    %486 = vst.msk [vmem:[#allocation2 + $0xec] sm:$0xf] %vm456, %v421
    %487 = vst.msk [vmem:[#allocation2 + $0xf4] sm:$0xf] %vm456, %v422
    %488 = vst.msk [vmem:[#allocation2 + $0xfc] sm:$0xf] %vm456, %v423
    %v489 = vld [vmem:[#allocation2] sm:$0xff]
    %v490 = vld [vmem:[#allocation2 + $0x8] sm:$0xff]
    %v491 = vld [vmem:[#allocation2 + $0x10] sm:$0xff]
    %v492 = vld [vmem:[#allocation2 + $0x18] sm:$0xff]
    %v493 = vld [vmem:[#allocation2 + $0x20] sm:$0xff]
    %v494 = vld [vmem:[#allocation2 + $0x28] sm:$0xff]
    %v495 = vld [vmem:[#allocation2 + $0x30] sm:$0xff]
    %v496 = vld [vmem:[#allocation2 + $0x38] sm:$0xff]
    %v497 = vld [vmem:[#allocation2 + $0x40] sm:$0xff]
    %v498 = vld [vmem:[#allocation2 + $0x48] sm:$0xff]
    %v499 = vld [vmem:[#allocation2 + $0x50] sm:$0xff]
    %v500 = vld [vmem:[#allocation2 + $0x58] sm:$0xff]
    %v501 = vld [vmem:[#allocation2 + $0x60] sm:$0xff]
    %v502 = vld [vmem:[#allocation2 + $0x68] sm:$0xff]
    %v503 = vld [vmem:[#allocation2 + $0x70] sm:$0xff]
    %v504 = vld [vmem:[#allocation2 + $0x78] sm:$0xff]
    %v505 = vld [vmem:[#allocation2 + $0x80] sm:$0xff]
    %v506 = vld [vmem:[#allocation2 + $0x88] sm:$0xff]
    %v507 = vld [vmem:[#allocation2 + $0x90] sm:$0xff]
    %v508 = vld [vmem:[#allocation2 + $0x98] sm:$0xff]
    %v509 = vld [vmem:[#allocation2 + $0xa0] sm:$0xff]
    %v510 = vld [vmem:[#allocation2 + $0xa8] sm:$0xff]
    %v511 = vld [vmem:[#allocation2 + $0xb0] sm:$0xff]
    %v512 = vld [vmem:[#allocation2 + $0xb8] sm:$0xff]
    %v513 = vld [vmem:[#allocation2 + $0xc0] sm:$0xff]
    %v514 = vld [vmem:[#allocation2 + $0xc8] sm:$0xff]
    %v515 = vld [vmem:[#allocation2 + $0xd0] sm:$0xff]
    %v516 = vld [vmem:[#allocation2 + $0xd8] sm:$0xff]
    %v517 = vld [vmem:[#allocation2 + $0xe0] sm:$0xff]
    %v518 = vld [vmem:[#allocation2 + $0xe8] sm:$0xff]
    %v519 = vld [vmem:[#allocation2 + $0xf0] sm:$0xff]
    %v520 = vld [vmem:[#allocation2 + $0xf8] sm:$0xff]
    %v521 = vld [vmem:[#allocation3] sm:$0xff]
    %v522 = vld [vmem:[#allocation3 + $0x8] sm:$0xff]
    %v523 = vld [vmem:[#allocation3 + $0x10] sm:$0xff]
    %v524 = vld [vmem:[#allocation3 + $0x18] sm:$0xff]
    %v525 = vld [vmem:[#allocation3 + $0x20] sm:$0xff]
    %v526 = vld [vmem:[#allocation3 + $0x28] sm:$0xff]
    %v527 = vld [vmem:[#allocation3 + $0x30] sm:$0xff]
    %v528 = vld [vmem:[#allocation3 + $0x38] sm:$0xff]
    %v529 = vld [vmem:[#allocation3 + $0x40] sm:$0xff]
    %v530 = vld [vmem:[#allocation3 + $0x48] sm:$0xff]
    %v531 = vld [vmem:[#allocation3 + $0x50] sm:$0xff]
    %v532 = vld [vmem:[#allocation3 + $0x58] sm:$0xff]
    %v533 = vld [vmem:[#allocation3 + $0x60] sm:$0xff]
    %v534 = vld [vmem:[#allocation3 + $0x68] sm:$0xff]
    %v535 = vld [vmem:[#allocation3 + $0x70] sm:$0xff]
    %v536 = vld [vmem:[#allocation3 + $0x78] sm:$0xff]
    %v537 = vld [vmem:[#allocation3 + $0x80] sm:$0xff]
    %v538 = vld [vmem:[#allocation3 + $0x88] sm:$0xff]
    %v539 = vld [vmem:[#allocation3 + $0x90] sm:$0xff]
    %v540 = vld [vmem:[#allocation3 + $0x98] sm:$0xff]
    %v541 = vld [vmem:[#allocation3 + $0xa0] sm:$0xff]
    %v542 = vld [vmem:[#allocation3 + $0xa8] sm:$0xff]
    %v543 = vld [vmem:[#allocation3 + $0xb0] sm:$0xff]
    %v544 = vld [vmem:[#allocation3 + $0xb8] sm:$0xff]
    %v545 = vld [vmem:[#allocation3 + $0xc0] sm:$0xff]
    %v546 = vld [vmem:[#allocation3 + $0xc8] sm:$0xff]
    %v547 = vld [vmem:[#allocation3 + $0xd0] sm:$0xff]
    %v548 = vld [vmem:[#allocation3 + $0xd8] sm:$0xff]
    %v549 = vld [vmem:[#allocation3 + $0xe0] sm:$0xff]
    %v550 = vld [vmem:[#allocation3 + $0xe8] sm:$0xff]
    %v551 = vld [vmem:[#allocation3 + $0xf0] sm:$0xff]
    %v552 = vld [vmem:[#allocation3 + $0xf8] sm:$0xff]
    %v553 = vld [vmem:[%s3] sm:$0x3]
    %v555 = vlaneseq
    %v556 = vshrl.u32 %v555, 7
    %v557 = vsub.s32 0, %v556
    %v558 = vrot.slane %v553, %v557
    %v559 = vlaneseq
    %v560 = vshrl.u32 %v559, 7
    %v561 = vsub.s32 1, %v560
    %v562 = vrot.slane %v553, %v561
    %v597 = vunpack.c.l.b16 %v489
    %v598 = vunpack.c.h.b16 %v489
    %v599 = vunpack.c.l.b16 %v490
    %v600 = vunpack.c.h.b16 %v490
    %v601 = vunpack.c.l.b16 %v491
    %v602 = vunpack.c.h.b16 %v491
    %v603 = vunpack.c.l.b16 %v492
    %v604 = vunpack.c.h.b16 %v492
    %v605 = vunpack.c.l.b16 %v493
    %v606 = vunpack.c.h.b16 %v493
    %v607 = vunpack.c.l.b16 %v494
    %v608 = vunpack.c.h.b16 %v494
    %v609 = vunpack.c.l.b16 %v495
    %v610 = vunpack.c.h.b16 %v495
    %v611 = vunpack.c.l.b16 %v496
    %v612 = vunpack.c.h.b16 %v496
    %v613 = vunpack.c.l.b16 %v497
    %v614 = vunpack.c.h.b16 %v497
    %v615 = vunpack.c.l.b16 %v498
    %v616 = vunpack.c.h.b16 %v498
    %v617 = vunpack.c.l.b16 %v499
    %v618 = vunpack.c.h.b16 %v499
    %v619 = vunpack.c.l.b16 %v500
    %v620 = vunpack.c.h.b16 %v500
    %v621 = vunpack.c.l.b16 %v501
    %v622 = vunpack.c.h.b16 %v501
    %v623 = vunpack.c.l.b16 %v502
    %v624 = vunpack.c.h.b16 %v502
    %v625 = vunpack.c.l.b16 %v503
    %v626 = vunpack.c.h.b16 %v503
    %v627 = vunpack.c.l.b16 %v504
    %v628 = vunpack.c.h.b16 %v504
    %v629 = vunpack.c.l.b16 %v505
    %v630 = vunpack.c.h.b16 %v505
    %v631 = vunpack.c.l.b16 %v506
    %v632 = vunpack.c.h.b16 %v506
    %v633 = vunpack.c.l.b16 %v507
    %v634 = vunpack.c.h.b16 %v507
    %v635 = vunpack.c.l.b16 %v508
    %v636 = vunpack.c.h.b16 %v508
    %v637 = vunpack.c.l.b16 %v509
    %v638 = vunpack.c.h.b16 %v509
    %v639 = vunpack.c.l.b16 %v510
    %v640 = vunpack.c.h.b16 %v510
    %v641 = vunpack.c.l.b16 %v511
    %v642 = vunpack.c.h.b16 %v511
    %v643 = vunpack.c.l.b16 %v512
    %v644 = vunpack.c.h.b16 %v512
    %v645 = vunpack.c.l.b16 %v513
    %v646 = vunpack.c.h.b16 %v513
    %v647 = vunpack.c.l.b16 %v514
    %v648 = vunpack.c.h.b16 %v514
    %v649 = vunpack.c.l.b16 %v515
    %v650 = vunpack.c.h.b16 %v515
    %v651 = vunpack.c.l.b16 %v516
    %v652 = vunpack.c.h.b16 %v516
    %v653 = vunpack.c.l.b16 %v517
    %v654 = vunpack.c.h.b16 %v517
    %v655 = vunpack.c.l.b16 %v518
    %v656 = vunpack.c.h.b16 %v518
    %v657 = vunpack.c.l.b16 %v519
    %v658 = vunpack.c.h.b16 %v519
    %v659 = vunpack.c.l.b16 %v520
    %v660 = vunpack.c.h.b16 %v520
    %v661 = vpack.c.b16 %v599, %v597
    %v662 = vpack.c.b16 %v600, %v598
    %v663 = vpack.c.b16 %v603, %v601
    %v664 = vpack.c.b16 %v604, %v602
    %v665 = vpack.c.b16 %v607, %v605
    %v666 = vpack.c.b16 %v608, %v606
    %v667 = vpack.c.b16 %v611, %v609
    %v668 = vpack.c.b16 %v612, %v610
    %v669 = vpack.c.b16 %v615, %v613
    %v670 = vpack.c.b16 %v616, %v614
    %v671 = vpack.c.b16 %v619, %v617
    %v672 = vpack.c.b16 %v620, %v618
    %v673 = vpack.c.b16 %v623, %v621
    %v674 = vpack.c.b16 %v624, %v622
    %v675 = vpack.c.b16 %v627, %v625
    %v676 = vpack.c.b16 %v628, %v626
    %v677 = vpack.c.b16 %v631, %v629
    %v678 = vpack.c.b16 %v632, %v630
    %v679 = vpack.c.b16 %v635, %v633
    %v680 = vpack.c.b16 %v636, %v634
    %v681 = vpack.c.b16 %v639, %v637
    %v682 = vpack.c.b16 %v640, %v638
    %v683 = vpack.c.b16 %v643, %v641
    %v684 = vpack.c.b16 %v644, %v642
    %v685 = vpack.c.b16 %v647, %v645
    %v686 = vpack.c.b16 %v648, %v646
    %v687 = vpack.c.b16 %v651, %v649
    %v688 = vpack.c.b16 %v652, %v650
    %v689 = vpack.c.b16 %v655, %v653
    %v690 = vpack.c.b16 %v656, %v654
    %v691 = vpack.c.b16 %v659, %v657
    %v692 = vpack.c.b16 %v660, %v658
    %v757 = vunpack.c.l.b16 %v521
    %v758 = vunpack.c.h.b16 %v521
    %v759 = vunpack.c.l.b16 %v522
    %v760 = vunpack.c.h.b16 %v522
    %v761 = vunpack.c.l.b16 %v523
    %v762 = vunpack.c.h.b16 %v523
    %v763 = vunpack.c.l.b16 %v524
    %v764 = vunpack.c.h.b16 %v524
    %v765 = vunpack.c.l.b16 %v525
    %v766 = vunpack.c.h.b16 %v525
    %v767 = vunpack.c.l.b16 %v526
    %v768 = vunpack.c.h.b16 %v526
    %v769 = vunpack.c.l.b16 %v527
    %v770 = vunpack.c.h.b16 %v527
    %v771 = vunpack.c.l.b16 %v528
    %v772 = vunpack.c.h.b16 %v528
    %v773 = vunpack.c.l.b16 %v529
    %v774 = vunpack.c.h.b16 %v529
    %v775 = vunpack.c.l.b16 %v530
    %v776 = vunpack.c.h.b16 %v530
    %v777 = vunpack.c.l.b16 %v531
    %v778 = vunpack.c.h.b16 %v531
    %v779 = vunpack.c.l.b16 %v532
    %v780 = vunpack.c.h.b16 %v532
    %v781 = vunpack.c.l.b16 %v533
    %v782 = vunpack.c.h.b16 %v533
    %v783 = vunpack.c.l.b16 %v534
    %v784 = vunpack.c.h.b16 %v534
    %v785 = vunpack.c.l.b16 %v535
    %v786 = vunpack.c.h.b16 %v535
    %v787 = vunpack.c.l.b16 %v536
    %v788 = vunpack.c.h.b16 %v536
    %v789 = vunpack.c.l.b16 %v537
    %v790 = vunpack.c.h.b16 %v537
    %v791 = vunpack.c.l.b16 %v538
    %v792 = vunpack.c.h.b16 %v538
    %v793 = vunpack.c.l.b16 %v539
    %v794 = vunpack.c.h.b16 %v539
    %v795 = vunpack.c.l.b16 %v540
    %v796 = vunpack.c.h.b16 %v540
    %v797 = vunpack.c.l.b16 %v541
    %v798 = vunpack.c.h.b16 %v541
    %v799 = vunpack.c.l.b16 %v542
    %v800 = vunpack.c.h.b16 %v542
    %v801 = vunpack.c.l.b16 %v543
    %v802 = vunpack.c.h.b16 %v543
    %v803 = vunpack.c.l.b16 %v544
    %v804 = vunpack.c.h.b16 %v544
    %v805 = vunpack.c.l.b16 %v545
    %v806 = vunpack.c.h.b16 %v545
    %v807 = vunpack.c.l.b16 %v546
    %v808 = vunpack.c.h.b16 %v546
    %v809 = vunpack.c.l.b16 %v547
    %v810 = vunpack.c.h.b16 %v547
    %v811 = vunpack.c.l.b16 %v548
    %v812 = vunpack.c.h.b16 %v548
    %v813 = vunpack.c.l.b16 %v549
    %v814 = vunpack.c.h.b16 %v549
    %v815 = vunpack.c.l.b16 %v550
    %v816 = vunpack.c.h.b16 %v550
    %v817 = vunpack.c.l.b16 %v551
    %v818 = vunpack.c.h.b16 %v551
    %v819 = vunpack.c.l.b16 %v552
    %v820 = vunpack.c.h.b16 %v552
    %v821 = vpack.c.b16 %v759, %v757
    %v822 = vpack.c.b16 %v760, %v758
    %v823 = vpack.c.b16 %v763, %v761
    %v824 = vpack.c.b16 %v764, %v762
    %v825 = vpack.c.b16 %v767, %v765
    %v826 = vpack.c.b16 %v768, %v766
    %v827 = vpack.c.b16 %v771, %v769
    %v828 = vpack.c.b16 %v772, %v770
    %v829 = vpack.c.b16 %v775, %v773
    %v830 = vpack.c.b16 %v776, %v774
    %v831 = vpack.c.b16 %v779, %v777
    %v832 = vpack.c.b16 %v780, %v778
    %v833 = vpack.c.b16 %v783, %v781
    %v834 = vpack.c.b16 %v784, %v782
    %v835 = vpack.c.b16 %v787, %v785
    %v836 = vpack.c.b16 %v788, %v786
    %v837 = vpack.c.b16 %v791, %v789
    %v838 = vpack.c.b16 %v792, %v790
    %v839 = vpack.c.b16 %v795, %v793
    %v840 = vpack.c.b16 %v796, %v794
    %v841 = vpack.c.b16 %v799, %v797
    %v842 = vpack.c.b16 %v800, %v798
    %v843 = vpack.c.b16 %v803, %v801
    %v844 = vpack.c.b16 %v804, %v802
    %v845 = vpack.c.b16 %v807, %v805
    %v846 = vpack.c.b16 %v808, %v806
    %v847 = vpack.c.b16 %v811, %v809
    %v848 = vpack.c.b16 %v812, %v810
    %v849 = vpack.c.b16 %v815, %v813
    %v850 = vpack.c.b16 %v816, %v814
    %v851 = vpack.c.b16 %v819, %v817
    %v852 = vpack.c.b16 %v820, %v818
    %885 = vmatprep.subr.bf16.mxu0 %v836
    %886 = vmatpush1.bf16.msra.mxu0 %v835
    %887 = vmatprep.subr.bf16.mxu0 %v834
    %888 = vmatpush1.bf16.msra.mxu0 %v833
    %889 = vmatprep.subr.bf16.mxu0 %v832
    %890 = vmatpush1.bf16.msra.mxu0 %v831
    %891 = vmatprep.subr.bf16.mxu0 %v830
    %892 = vmatpush1.bf16.msra.mxu0 %v829
    %893 = vmatprep.subr.bf16.mxu0 %v828
    %894 = vmatpush1.bf16.msra.mxu0 %v827
    %895 = vmatprep.subr.bf16.mxu0 %v826
    %896 = vmatpush1.bf16.msra.mxu0 %v825
    %897 = vmatprep.subr.bf16.mxu0 %v824
    %898 = vmatpush1.bf16.msra.mxu0 %v823
    %899 = vmatprep.subr.bf16.mxu0 %v822
    %900 = vmatpush1.bf16.msra.mxu0 %v821
    %901 = vmatprep.subr.bf16.mxu0 %v852
    %902 = vmatpush2.bf16.msra.mxu0 %v851
    %903 = vmatprep.subr.bf16.mxu0 %v850
    %904 = vmatpush2.bf16.msra.mxu0 %v849
    %905 = vmatprep.subr.bf16.mxu0 %v848
    %906 = vmatpush2.bf16.msra.mxu0 %v847
    %907 = vmatprep.subr.bf16.mxu0 %v846
    %908 = vmatpush2.bf16.msra.mxu0 %v845
    %909 = vmatprep.subr.bf16.mxu0 %v844
    %910 = vmatpush2.bf16.msra.mxu0 %v843
    %911 = vmatprep.subr.bf16.mxu0 %v842
    %912 = vmatpush2.bf16.msra.mxu0 %v841
    %913 = vmatprep.subr.bf16.mxu0 %v840
    %914 = vmatpush2.bf16.msra.mxu0 %v839
    %915 = vmatprep.subr.bf16.mxu0 %v838
    %916 = vmatpush2.bf16.msra.mxu0 %v837
    %917 = vmatprep.mubr.bf16.mxu0 %v662
    %918 = vmatmul.mubr.bf16.gmra.mxu0 %v661
    %v919 = vpop.f32.mrf.mxu0
    %v920 = vadd.f32 %v558, %v919
    %v921 = vpop.f32.mrf.mxu0
    %v922 = vadd.f32 %v562, %v921
    %v923 = vpop.f32.mrf.mxu0
    %v924 = vadd.f32 %v558, %v923
    %v925 = vpop.f32.mrf.mxu0
    %v926 = vadd.f32 %v562, %v925
    %927 = vmatprep.mubr.bf16.mxu0 %v664
    %928 = vmatmul.mubr.bf16.gmra.mxu0 %v663
    %v929 = vpop.f32.mrf.mxu0
    %v930 = vadd.f32 %v558, %v929
    %v931 = vpop.f32.mrf.mxu0
    %v932 = vadd.f32 %v562, %v931
    %v933 = vpop.f32.mrf.mxu0
    %v934 = vadd.f32 %v558, %v933
    %v935 = vpop.f32.mrf.mxu0
    %v936 = vadd.f32 %v562, %v935
    %937 = vmatprep.mubr.bf16.mxu0 %v666
    %938 = vmatmul.mubr.bf16.gmra.mxu0 %v665
    %v939 = vpop.f32.mrf.mxu0
    %v940 = vadd.f32 %v558, %v939
    %v941 = vpop.f32.mrf.mxu0
    %v942 = vadd.f32 %v562, %v941
    %v943 = vpop.f32.mrf.mxu0
    %v944 = vadd.f32 %v558, %v943
    %v945 = vpop.f32.mrf.mxu0
    %v946 = vadd.f32 %v562, %v945
    %947 = vmatprep.mubr.bf16.mxu0 %v668
    %948 = vmatmul.mubr.bf16.gmra.mxu0 %v667
    %v949 = vpop.f32.mrf.mxu0
    %v950 = vadd.f32 %v558, %v949
    %v951 = vpop.f32.mrf.mxu0
    %v952 = vadd.f32 %v562, %v951
    %v953 = vpop.f32.mrf.mxu0
    %v954 = vadd.f32 %v558, %v953
    %v955 = vpop.f32.mrf.mxu0
    %v956 = vadd.f32 %v562, %v955
    %957 = vmatprep.mubr.bf16.mxu0 %v670
    %958 = vmatmul.mubr.bf16.gmra.mxu0 %v669
    %v959 = vpop.f32.mrf.mxu0
    %v960 = vadd.f32 %v558, %v959
    %v961 = vpop.f32.mrf.mxu0
    %v962 = vadd.f32 %v562, %v961
    %v963 = vpop.f32.mrf.mxu0
    %v964 = vadd.f32 %v558, %v963
    %v965 = vpop.f32.mrf.mxu0
    %v966 = vadd.f32 %v562, %v965
    %967 = vmatprep.mubr.bf16.mxu0 %v672
    %968 = vmatmul.mubr.bf16.gmra.mxu0 %v671
    %v969 = vpop.f32.mrf.mxu0
    %v970 = vadd.f32 %v558, %v969
    %v971 = vpop.f32.mrf.mxu0
    %v972 = vadd.f32 %v562, %v971
    %v973 = vpop.f32.mrf.mxu0
    %v974 = vadd.f32 %v558, %v973
    %v975 = vpop.f32.mrf.mxu0
    %v976 = vadd.f32 %v562, %v975
    %977 = vmatprep.mubr.bf16.mxu0 %v674
    %978 = vmatmul.mubr.bf16.gmra.mxu0 %v673
    %v979 = vpop.f32.mrf.mxu0
    %v980 = vadd.f32 %v558, %v979
    %v981 = vpop.f32.mrf.mxu0
    %v982 = vadd.f32 %v562, %v981
    %v983 = vpop.f32.mrf.mxu0
    %v984 = vadd.f32 %v558, %v983
    %v985 = vpop.f32.mrf.mxu0
    %v986 = vadd.f32 %v562, %v985
    %987 = vmatprep.mubr.bf16.mxu0 %v676
    %988 = vmatmul.mubr.bf16.gmra.mxu0 %v675
    %v989 = vpop.f32.mrf.mxu0
    %v990 = vadd.f32 %v558, %v989
    %v991 = vpop.f32.mrf.mxu0
    %v992 = vadd.f32 %v562, %v991
    %v993 = vpop.f32.mrf.mxu0
    %v994 = vadd.f32 %v558, %v993
    %v995 = vpop.f32.mrf.mxu0
    %v996 = vadd.f32 %v562, %v995
    %997 = vmatprep.mubr.bf16.mxu0 %v678
    %998 = vmatmul.mubr.bf16.gmra.mxu0 %v677
    %v999 = vpop.f32.mrf.mxu0
    %v1000 = vadd.f32 %v558, %v999
    %v1001 = vpop.f32.mrf.mxu0
    %v1002 = vadd.f32 %v562, %v1001
    %v1003 = vpop.f32.mrf.mxu0
    %v1004 = vadd.f32 %v558, %v1003
    %v1005 = vpop.f32.mrf.mxu0
    %v1006 = vadd.f32 %v562, %v1005
    %1007 = vmatprep.mubr.bf16.mxu0 %v680
    %1008 = vmatmul.mubr.bf16.gmra.mxu0 %v679
    %v1009 = vpop.f32.mrf.mxu0
    %v1010 = vadd.f32 %v558, %v1009
    %v1011 = vpop.f32.mrf.mxu0
    %v1012 = vadd.f32 %v562, %v1011
    %v1013 = vpop.f32.mrf.mxu0
    %v1014 = vadd.f32 %v558, %v1013
    %v1015 = vpop.f32.mrf.mxu0
    %v1016 = vadd.f32 %v562, %v1015
    %1017 = vmatprep.mubr.bf16.mxu0 %v682
    %1018 = vmatmul.mubr.bf16.gmra.mxu0 %v681
    %v1019 = vpop.f32.mrf.mxu0
    %v1020 = vadd.f32 %v558, %v1019
    %v1021 = vpop.f32.mrf.mxu0
    %v1022 = vadd.f32 %v562, %v1021
    %v1023 = vpop.f32.mrf.mxu0
    %v1024 = vadd.f32 %v558, %v1023
    %v1025 = vpop.f32.mrf.mxu0
    %v1026 = vadd.f32 %v562, %v1025
    %1027 = vmatprep.mubr.bf16.mxu0 %v684
    %1028 = vmatmul.mubr.bf16.gmra.mxu0 %v683
    %v1029 = vpop.f32.mrf.mxu0
    %v1030 = vadd.f32 %v558, %v1029
    %v1031 = vpop.f32.mrf.mxu0
    %v1032 = vadd.f32 %v562, %v1031
    %v1033 = vpop.f32.mrf.mxu0
    %v1034 = vadd.f32 %v558, %v1033
    %v1035 = vpop.f32.mrf.mxu0
    %v1036 = vadd.f32 %v562, %v1035
    %1037 = vmatprep.mubr.bf16.mxu0 %v686
    %1038 = vmatmul.mubr.bf16.gmra.mxu0 %v685
    %v1039 = vpop.f32.mrf.mxu0
    %v1040 = vadd.f32 %v558, %v1039
    %v1041 = vpop.f32.mrf.mxu0
    %v1042 = vadd.f32 %v562, %v1041
    %v1043 = vpop.f32.mrf.mxu0
    %v1044 = vadd.f32 %v558, %v1043
    %v1045 = vpop.f32.mrf.mxu0
    %v1046 = vadd.f32 %v562, %v1045
    %1047 = vmatprep.mubr.bf16.mxu0 %v688
    %1048 = vmatmul.mubr.bf16.gmra.mxu0 %v687
    %v1049 = vpop.f32.mrf.mxu0
    %v1050 = vadd.f32 %v558, %v1049
    %v1051 = vpop.f32.mrf.mxu0
    %v1052 = vadd.f32 %v562, %v1051
    %v1053 = vpop.f32.mrf.mxu0
    %v1054 = vadd.f32 %v558, %v1053
    %v1055 = vpop.f32.mrf.mxu0
    %v1056 = vadd.f32 %v562, %v1055
    %1057 = vmatprep.mubr.bf16.mxu0 %v690
    %1058 = vmatmul.mubr.bf16.gmra.mxu0 %v689
    %v1059 = vpop.f32.mrf.mxu0
    %v1060 = vadd.f32 %v558, %v1059
    %v1061 = vpop.f32.mrf.mxu0
    %v1062 = vadd.f32 %v562, %v1061
    %v1063 = vpop.f32.mrf.mxu0
    %v1064 = vadd.f32 %v558, %v1063
    %v1065 = vpop.f32.mrf.mxu0
    %v1066 = vadd.f32 %v562, %v1065
    %1067 = vmatprep.mubr.bf16.mxu0 %v692
    %1068 = vmatmul.mubr.bf16.gmra.mxu0 %v691
    %v1069 = vpop.f32.mrf.mxu0
    %v1070 = vadd.f32 %v558, %v1069
    %v1071 = vpop.f32.mrf.mxu0
    %v1072 = vadd.f32 %v562, %v1071
    %v1073 = vpop.f32.mrf.mxu0
    %v1074 = vadd.f32 %v558, %v1073
    %v1075 = vpop.f32.mrf.mxu0
    %v1076 = vadd.f32 %v562, %v1075
    %1077 = vdwg.mxu0
    %v1078 = vmax.f32 %v920, 0.0
    %v1079 = vmax.f32 %v922, 0.0
    %v1080 = vmax.f32 %v924, 0.0
    %v1081 = vmax.f32 %v926, 0.0
    %v1082 = vmax.f32 %v930, 0.0
    %v1083 = vmax.f32 %v932, 0.0
    %v1084 = vmax.f32 %v934, 0.0
    %v1085 = vmax.f32 %v936, 0.0
    %v1086 = vmax.f32 %v940, 0.0
    %v1087 = vmax.f32 %v942, 0.0
    %v1088 = vmax.f32 %v944, 0.0
    %v1089 = vmax.f32 %v946, 0.0
    %v1090 = vmax.f32 %v950, 0.0
    %v1091 = vmax.f32 %v952, 0.0
    %v1092 = vmax.f32 %v954, 0.0
    %v1093 = vmax.f32 %v956, 0.0
    %v1094 = vmax.f32 %v960, 0.0
    %v1095 = vmax.f32 %v962, 0.0
    %v1096 = vmax.f32 %v964, 0.0
    %v1097 = vmax.f32 %v966, 0.0
    %v1098 = vmax.f32 %v970, 0.0
    %v1099 = vmax.f32 %v972, 0.0
    %v1100 = vmax.f32 %v974, 0.0
    %v1101 = vmax.f32 %v976, 0.0
    %v1102 = vmax.f32 %v980, 0.0
    %v1103 = vmax.f32 %v982, 0.0
    %v1104 = vmax.f32 %v984, 0.0
    %v1105 = vmax.f32 %v986, 0.0
    %v1106 = vmax.f32 %v990, 0.0
    %v1107 = vmax.f32 %v992, 0.0
    %v1108 = vmax.f32 %v994, 0.0
    %v1109 = vmax.f32 %v996, 0.0
    %v1110 = vmax.f32 %v1000, 0.0
    %v1111 = vmax.f32 %v1002, 0.0
    %v1112 = vmax.f32 %v1004, 0.0
    %v1113 = vmax.f32 %v1006, 0.0
    %v1114 = vmax.f32 %v1010, 0.0
    %v1115 = vmax.f32 %v1012, 0.0
    %v1116 = vmax.f32 %v1014, 0.0
    %v1117 = vmax.f32 %v1016, 0.0
    %v1118 = vmax.f32 %v1020, 0.0
    %v1119 = vmax.f32 %v1022, 0.0
    %v1120 = vmax.f32 %v1024, 0.0
    %v1121 = vmax.f32 %v1026, 0.0
    %v1122 = vmax.f32 %v1030, 0.0
    %v1123 = vmax.f32 %v1032, 0.0
    %v1124 = vmax.f32 %v1034, 0.0
    %v1125 = vmax.f32 %v1036, 0.0
    %v1126 = vmax.f32 %v1040, 0.0
    %v1127 = vmax.f32 %v1042, 0.0
    %v1128 = vmax.f32 %v1044, 0.0
    %v1129 = vmax.f32 %v1046, 0.0
    %v1130 = vmax.f32 %v1050, 0.0
    %v1131 = vmax.f32 %v1052, 0.0
    %v1132 = vmax.f32 %v1054, 0.0
    %v1133 = vmax.f32 %v1056, 0.0
    %v1134 = vmax.f32 %v1060, 0.0
    %v1135 = vmax.f32 %v1062, 0.0
    %v1136 = vmax.f32 %v1064, 0.0
    %v1137 = vmax.f32 %v1066, 0.0
    %v1138 = vmax.f32 %v1070, 0.0
    %v1139 = vmax.f32 %v1072, 0.0
    %v1140 = vmax.f32 %v1074, 0.0
    %v1141 = vmax.f32 %v1076, 0.0
    %v1142 = vpack.c.bf16 %v1080, %v1078
    %v1143 = vpack.c.bf16 %v1081, %v1079
    %v1144 = vpack.c.bf16 %v1084, %v1082
    %v1145 = vpack.c.bf16 %v1085, %v1083
    %v1146 = vpack.c.bf16 %v1088, %v1086
    %v1147 = vpack.c.bf16 %v1089, %v1087
    %v1148 = vpack.c.bf16 %v1092, %v1090
    %v1149 = vpack.c.bf16 %v1093, %v1091
    %v1150 = vpack.c.bf16 %v1096, %v1094
    %v1151 = vpack.c.bf16 %v1097, %v1095
    %v1152 = vpack.c.bf16 %v1100, %v1098
    %v1153 = vpack.c.bf16 %v1101, %v1099
    %v1154 = vpack.c.bf16 %v1104, %v1102
    %v1155 = vpack.c.bf16 %v1105, %v1103
    %v1156 = vpack.c.bf16 %v1108, %v1106
    %v1157 = vpack.c.bf16 %v1109, %v1107
    %v1158 = vpack.c.bf16 %v1112, %v1110
    %v1159 = vpack.c.bf16 %v1113, %v1111
    %v1160 = vpack.c.bf16 %v1116, %v1114
    %v1161 = vpack.c.bf16 %v1117, %v1115
    %v1162 = vpack.c.bf16 %v1120, %v1118
    %v1163 = vpack.c.bf16 %v1121, %v1119
    %v1164 = vpack.c.bf16 %v1124, %v1122
    %v1165 = vpack.c.bf16 %v1125, %v1123
    %v1166 = vpack.c.bf16 %v1128, %v1126
    %v1167 = vpack.c.bf16 %v1129, %v1127
    %v1168 = vpack.c.bf16 %v1132, %v1130
    %v1169 = vpack.c.bf16 %v1133, %v1131
    %v1170 = vpack.c.bf16 %v1136, %v1134
    %v1171 = vpack.c.bf16 %v1137, %v1135
    %v1172 = vpack.c.bf16 %v1140, %v1138
    %v1173 = vpack.c.bf16 %v1141, %v1139
    %v1174 = vld [vmem:[#allocation6] sm:$0xff]
    %v1175 = vld [vmem:[#allocation6 + $0x8] sm:$0xff]
    %v1176 = vld [vmem:[#allocation6 + $0x10] sm:$0xff]
    %v1177 = vld [vmem:[#allocation6 + $0x18] sm:$0xff]
    %v1178 = vld [vmem:[#allocation6 + $0x20] sm:$0xff]
    %v1179 = vld [vmem:[#allocation6 + $0x28] sm:$0xff]
    %v1180 = vld [vmem:[#allocation6 + $0x30] sm:$0xff]
    %v1181 = vld [vmem:[#allocation6 + $0x38] sm:$0xff]
    %v1182 = vld [vmem:[#allocation6 + $0x40] sm:$0xff]
    %v1183 = vld [vmem:[#allocation6 + $0x48] sm:$0xff]
    %v1184 = vld [vmem:[#allocation6 + $0x50] sm:$0xff]
    %v1185 = vld [vmem:[#allocation6 + $0x58] sm:$0xff]
    %v1186 = vld [vmem:[#allocation6 + $0x60] sm:$0xff]
    %v1187 = vld [vmem:[#allocation6 + $0x68] sm:$0xff]
    %v1188 = vld [vmem:[#allocation6 + $0x70] sm:$0xff]
    %v1189 = vld [vmem:[#allocation6 + $0x78] sm:$0xff]
    %v1190 = vld [vmem:[#allocation6 + $0x80] sm:$0xff]
    %v1191 = vld [vmem:[#allocation6 + $0x88] sm:$0xff]
    %v1192 = vld [vmem:[#allocation6 + $0x90] sm:$0xff]
    %v1193 = vld [vmem:[#allocation6 + $0x98] sm:$0xff]
    %v1194 = vld [vmem:[#allocation6 + $0xa0] sm:$0xff]
    %v1195 = vld [vmem:[#allocation6 + $0xa8] sm:$0xff]
    %v1196 = vld [vmem:[#allocation6 + $0xb0] sm:$0xff]
    %v1197 = vld [vmem:[#allocation6 + $0xb8] sm:$0xff]
    %v1198 = vld [vmem:[#allocation6 + $0xc0] sm:$0xff]
    %v1199 = vld [vmem:[#allocation6 + $0xc8] sm:$0xff]
    %v1200 = vld [vmem:[#allocation6 + $0xd0] sm:$0xff]
    %v1201 = vld [vmem:[#allocation6 + $0xd8] sm:$0xff]
    %v1202 = vld [vmem:[#allocation6 + $0xe0] sm:$0xff]
    %v1203 = vld [vmem:[#allocation6 + $0xe8] sm:$0xff]
    %v1204 = vld [vmem:[#allocation6 + $0xf0] sm:$0xff]
    %v1205 = vld [vmem:[#allocation6 + $0xf8] sm:$0xff]
    %v1206 = vld [vmem:[%s5] sm:$0x3]
    %v1208 = vlaneseq
    %v1209 = vshrl.u32 %v1208, 7
    %v1210 = vsub.s32 0, %v1209
    %v1211 = vrot.slane %v1206, %v1210
    %v1212 = vlaneseq
    %v1213 = vshrl.u32 %v1212, 7
    %v1214 = vsub.s32 1, %v1213
    %v1215 = vrot.slane %v1206, %v1214
    %v1250 = vunpack.c.l.b16 %v1174
    %v1251 = vunpack.c.h.b16 %v1174
    %v1252 = vunpack.c.l.b16 %v1175
    %v1253 = vunpack.c.h.b16 %v1175
    %v1254 = vunpack.c.l.b16 %v1176
    %v1255 = vunpack.c.h.b16 %v1176
    %v1256 = vunpack.c.l.b16 %v1177
    %v1257 = vunpack.c.h.b16 %v1177
    %v1258 = vunpack.c.l.b16 %v1178
    %v1259 = vunpack.c.h.b16 %v1178
    %v1260 = vunpack.c.l.b16 %v1179
    %v1261 = vunpack.c.h.b16 %v1179
    %v1262 = vunpack.c.l.b16 %v1180
    %v1263 = vunpack.c.h.b16 %v1180
    %v1264 = vunpack.c.l.b16 %v1181
    %v1265 = vunpack.c.h.b16 %v1181
    %v1266 = vunpack.c.l.b16 %v1182
    %v1267 = vunpack.c.h.b16 %v1182
    %v1268 = vunpack.c.l.b16 %v1183
    %v1269 = vunpack.c.h.b16 %v1183
    %v1270 = vunpack.c.l.b16 %v1184
    %v1271 = vunpack.c.h.b16 %v1184
    %v1272 = vunpack.c.l.b16 %v1185
    %v1273 = vunpack.c.h.b16 %v1185
    %v1274 = vunpack.c.l.b16 %v1186
    %v1275 = vunpack.c.h.b16 %v1186
    %v1276 = vunpack.c.l.b16 %v1187
    %v1277 = vunpack.c.h.b16 %v1187
    %v1278 = vunpack.c.l.b16 %v1188
    %v1279 = vunpack.c.h.b16 %v1188
    %v1280 = vunpack.c.l.b16 %v1189
    %v1281 = vunpack.c.h.b16 %v1189
    %v1282 = vunpack.c.l.b16 %v1190
    %v1283 = vunpack.c.h.b16 %v1190
    %v1284 = vunpack.c.l.b16 %v1191
    %v1285 = vunpack.c.h.b16 %v1191
    %v1286 = vunpack.c.l.b16 %v1192
    %v1287 = vunpack.c.h.b16 %v1192
    %v1288 = vunpack.c.l.b16 %v1193
    %v1289 = vunpack.c.h.b16 %v1193
    %v1290 = vunpack.c.l.b16 %v1194
    %v1291 = vunpack.c.h.b16 %v1194
    %v1292 = vunpack.c.l.b16 %v1195
    %v1293 = vunpack.c.h.b16 %v1195
    %v1294 = vunpack.c.l.b16 %v1196
    %v1295 = vunpack.c.h.b16 %v1196
    %v1296 = vunpack.c.l.b16 %v1197
    %v1297 = vunpack.c.h.b16 %v1197
    %v1298 = vunpack.c.l.b16 %v1198
    %v1299 = vunpack.c.h.b16 %v1198
    %v1300 = vunpack.c.l.b16 %v1199
    %v1301 = vunpack.c.h.b16 %v1199
    %v1302 = vunpack.c.l.b16 %v1200
    %v1303 = vunpack.c.h.b16 %v1200
    %v1304 = vunpack.c.l.b16 %v1201
    %v1305 = vunpack.c.h.b16 %v1201
    %v1306 = vunpack.c.l.b16 %v1202
    %v1307 = vunpack.c.h.b16 %v1202
    %v1308 = vunpack.c.l.b16 %v1203
    %v1309 = vunpack.c.h.b16 %v1203
    %v1310 = vunpack.c.l.b16 %v1204
    %v1311 = vunpack.c.h.b16 %v1204
    %v1312 = vunpack.c.l.b16 %v1205
    %v1313 = vunpack.c.h.b16 %v1205
    %v1314 = vpack.c.b16 %v1252, %v1250
    %v1315 = vpack.c.b16 %v1253, %v1251
    %v1316 = vpack.c.b16 %v1256, %v1254
    %v1317 = vpack.c.b16 %v1257, %v1255
    %v1318 = vpack.c.b16 %v1260, %v1258
    %v1319 = vpack.c.b16 %v1261, %v1259
    %v1320 = vpack.c.b16 %v1264, %v1262
    %v1321 = vpack.c.b16 %v1265, %v1263
    %v1322 = vpack.c.b16 %v1268, %v1266
    %v1323 = vpack.c.b16 %v1269, %v1267
    %v1324 = vpack.c.b16 %v1272, %v1270
    %v1325 = vpack.c.b16 %v1273, %v1271
    %v1326 = vpack.c.b16 %v1276, %v1274
    %v1327 = vpack.c.b16 %v1277, %v1275
    %v1328 = vpack.c.b16 %v1280, %v1278
    %v1329 = vpack.c.b16 %v1281, %v1279
    %v1330 = vpack.c.b16 %v1284, %v1282
    %v1331 = vpack.c.b16 %v1285, %v1283
    %v1332 = vpack.c.b16 %v1288, %v1286
    %v1333 = vpack.c.b16 %v1289, %v1287
    %v1334 = vpack.c.b16 %v1292, %v1290
    %v1335 = vpack.c.b16 %v1293, %v1291
    %v1336 = vpack.c.b16 %v1296, %v1294
    %v1337 = vpack.c.b16 %v1297, %v1295
    %v1338 = vpack.c.b16 %v1300, %v1298
    %v1339 = vpack.c.b16 %v1301, %v1299
    %v1340 = vpack.c.b16 %v1304, %v1302
    %v1341 = vpack.c.b16 %v1305, %v1303
    %v1342 = vpack.c.b16 %v1308, %v1306
    %v1343 = vpack.c.b16 %v1309, %v1307
    %v1344 = vpack.c.b16 %v1312, %v1310
    %v1345 = vpack.c.b16 %v1313, %v1311
    %1378 = vmatprep.subr.bf16.mxu0 %v1329
    %1379 = vmatpush1.bf16.msra.mxu0 %v1328
    %1380 = vmatprep.subr.bf16.mxu0 %v1327
    %1381 = vmatpush1.bf16.msra.mxu0 %v1326
    %1382 = vmatprep.subr.bf16.mxu0 %v1325
    %1383 = vmatpush1.bf16.msra.mxu0 %v1324
    %1384 = vmatprep.subr.bf16.mxu0 %v1323
    %1385 = vmatpush1.bf16.msra.mxu0 %v1322
    %1386 = vmatprep.subr.bf16.mxu0 %v1321
    %1387 = vmatpush1.bf16.msra.mxu0 %v1320
    %1388 = vmatprep.subr.bf16.mxu0 %v1319
    %1389 = vmatpush1.bf16.msra.mxu0 %v1318
    %1390 = vmatprep.subr.bf16.mxu0 %v1317
    %1391 = vmatpush1.bf16.msra.mxu0 %v1316
    %1392 = vmatprep.subr.bf16.mxu0 %v1315
    %1393 = vmatpush1.bf16.msra.mxu0 %v1314
    %1394 = vmatprep.subr.bf16.mxu0 %v1345
    %1395 = vmatpush2.bf16.msra.mxu0 %v1344
    %1396 = vmatprep.subr.bf16.mxu0 %v1343
    %1397 = vmatpush2.bf16.msra.mxu0 %v1342
    %1398 = vmatprep.subr.bf16.mxu0 %v1341
    %1399 = vmatpush2.bf16.msra.mxu0 %v1340
    %1400 = vmatprep.subr.bf16.mxu0 %v1339
    %1401 = vmatpush2.bf16.msra.mxu0 %v1338
    %1402 = vmatprep.subr.bf16.mxu0 %v1337
    %1403 = vmatpush2.bf16.msra.mxu0 %v1336
    %1404 = vmatprep.subr.bf16.mxu0 %v1335
    %1405 = vmatpush2.bf16.msra.mxu0 %v1334
    %1406 = vmatprep.subr.bf16.mxu0 %v1333
    %1407 = vmatpush2.bf16.msra.mxu0 %v1332
    %1408 = vmatprep.subr.bf16.mxu0 %v1331
    %1409 = vmatpush2.bf16.msra.mxu0 %v1330
    %1410 = vmatprep.mubr.bf16.mxu0 %v1143
    %1411 = vmatmul.mubr.bf16.gmra.mxu0 %v1142
    %v1412 = vpop.f32.mrf.mxu0
    %v1413 = vadd.f32 %v1211, %v1412
    %v1414 = vpop.f32.mrf.mxu0
    %v1415 = vadd.f32 %v1215, %v1414
    %v1416 = vpop.f32.mrf.mxu0
    %v1417 = vadd.f32 %v1211, %v1416
    %v1418 = vpop.f32.mrf.mxu0
    %v1419 = vadd.f32 %v1215, %v1418
    %1420 = vmatprep.mubr.bf16.mxu0 %v1145
    %1421 = vmatmul.mubr.bf16.gmra.mxu0 %v1144
    %v1422 = vpop.f32.mrf.mxu0
    %v1423 = vadd.f32 %v1211, %v1422
    %v1424 = vpop.f32.mrf.mxu0
    %v1425 = vadd.f32 %v1215, %v1424
    %v1426 = vpop.f32.mrf.mxu0
    %v1427 = vadd.f32 %v1211, %v1426
    %v1428 = vpop.f32.mrf.mxu0
    %v1429 = vadd.f32 %v1215, %v1428
    %1430 = vmatprep.mubr.bf16.mxu0 %v1147
    %1431 = vmatmul.mubr.bf16.gmra.mxu0 %v1146
    %v1432 = vpop.f32.mrf.mxu0
    %v1433 = vadd.f32 %v1211, %v1432
    %v1434 = vpop.f32.mrf.mxu0
    %v1435 = vadd.f32 %v1215, %v1434
    %v1436 = vpop.f32.mrf.mxu0
    %v1437 = vadd.f32 %v1211, %v1436
    %v1438 = vpop.f32.mrf.mxu0
    %v1439 = vadd.f32 %v1215, %v1438
    %1440 = vmatprep.mubr.bf16.mxu0 %v1149
    %1441 = vmatmul.mubr.bf16.gmra.mxu0 %v1148
    %v1442 = vpop.f32.mrf.mxu0
    %v1443 = vadd.f32 %v1211, %v1442
    %v1444 = vpop.f32.mrf.mxu0
    %v1445 = vadd.f32 %v1215, %v1444
    %v1446 = vpop.f32.mrf.mxu0
    %v1447 = vadd.f32 %v1211, %v1446
    %v1448 = vpop.f32.mrf.mxu0
    %v1449 = vadd.f32 %v1215, %v1448
    %1450 = vmatprep.mubr.bf16.mxu0 %v1151
    %1451 = vmatmul.mubr.bf16.gmra.mxu0 %v1150
    %v1452 = vpop.f32.mrf.mxu0
    %v1453 = vadd.f32 %v1211, %v1452
    %v1454 = vpop.f32.mrf.mxu0
    %v1455 = vadd.f32 %v1215, %v1454
    %v1456 = vpop.f32.mrf.mxu0
    %v1457 = vadd.f32 %v1211, %v1456
    %v1458 = vpop.f32.mrf.mxu0
    %v1459 = vadd.f32 %v1215, %v1458
    %1460 = vmatprep.mubr.bf16.mxu0 %v1153
    %1461 = vmatmul.mubr.bf16.gmra.mxu0 %v1152
    %v1462 = vpop.f32.mrf.mxu0
    %v1463 = vadd.f32 %v1211, %v1462
    %v1464 = vpop.f32.mrf.mxu0
    %v1465 = vadd.f32 %v1215, %v1464
    %v1466 = vpop.f32.mrf.mxu0
    %v1467 = vadd.f32 %v1211, %v1466
    %v1468 = vpop.f32.mrf.mxu0
    %v1469 = vadd.f32 %v1215, %v1468
    %1470 = vmatprep.mubr.bf16.mxu0 %v1155
    %1471 = vmatmul.mubr.bf16.gmra.mxu0 %v1154
    %v1472 = vpop.f32.mrf.mxu0
    %v1473 = vadd.f32 %v1211, %v1472
    %v1474 = vpop.f32.mrf.mxu0
    %v1475 = vadd.f32 %v1215, %v1474
    %v1476 = vpop.f32.mrf.mxu0
    %v1477 = vadd.f32 %v1211, %v1476
    %v1478 = vpop.f32.mrf.mxu0
    %v1479 = vadd.f32 %v1215, %v1478
    %1480 = vmatprep.mubr.bf16.mxu0 %v1157
    %1481 = vmatmul.mubr.bf16.gmra.mxu0 %v1156
    %v1482 = vpop.f32.mrf.mxu0
    %v1483 = vadd.f32 %v1211, %v1482
    %v1484 = vpop.f32.mrf.mxu0
    %v1485 = vadd.f32 %v1215, %v1484
    %v1486 = vpop.f32.mrf.mxu0
    %v1487 = vadd.f32 %v1211, %v1486
    %v1488 = vpop.f32.mrf.mxu0
    %v1489 = vadd.f32 %v1215, %v1488
    %1490 = vmatprep.mubr.bf16.mxu0 %v1159
    %1491 = vmatmul.mubr.bf16.gmra.mxu0 %v1158
    %v1492 = vpop.f32.mrf.mxu0
    %v1493 = vadd.f32 %v1211, %v1492
    %v1494 = vpop.f32.mrf.mxu0
    %v1495 = vadd.f32 %v1215, %v1494
    %v1496 = vpop.f32.mrf.mxu0
    %v1497 = vadd.f32 %v1211, %v1496
    %v1498 = vpop.f32.mrf.mxu0
    %v1499 = vadd.f32 %v1215, %v1498
    %1500 = vmatprep.mubr.bf16.mxu0 %v1161
    %1501 = vmatmul.mubr.bf16.gmra.mxu0 %v1160
    %v1502 = vpop.f32.mrf.mxu0
    %v1503 = vadd.f32 %v1211, %v1502
    %v1504 = vpop.f32.mrf.mxu0
    %v1505 = vadd.f32 %v1215, %v1504
    %v1506 = vpop.f32.mrf.mxu0
    %v1507 = vadd.f32 %v1211, %v1506
    %v1508 = vpop.f32.mrf.mxu0
    %v1509 = vadd.f32 %v1215, %v1508
    %1510 = vmatprep.mubr.bf16.mxu0 %v1163
    %1511 = vmatmul.mubr.bf16.gmra.mxu0 %v1162
    %v1512 = vpop.f32.mrf.mxu0
    %v1513 = vadd.f32 %v1211, %v1512
    %v1514 = vpop.f32.mrf.mxu0
    %v1515 = vadd.f32 %v1215, %v1514
    %v1516 = vpop.f32.mrf.mxu0
    %v1517 = vadd.f32 %v1211, %v1516
    %v1518 = vpop.f32.mrf.mxu0
    %v1519 = vadd.f32 %v1215, %v1518
    %1520 = vmatprep.mubr.bf16.mxu0 %v1165
    %1521 = vmatmul.mubr.bf16.gmra.mxu0 %v1164
    %v1522 = vpop.f32.mrf.mxu0
    %v1523 = vadd.f32 %v1211, %v1522
    %v1524 = vpop.f32.mrf.mxu0
    %v1525 = vadd.f32 %v1215, %v1524
    %v1526 = vpop.f32.mrf.mxu0
    %v1527 = vadd.f32 %v1211, %v1526
    %v1528 = vpop.f32.mrf.mxu0
    %v1529 = vadd.f32 %v1215, %v1528
    %1530 = vmatprep.mubr.bf16.mxu0 %v1167
    %1531 = vmatmul.mubr.bf16.gmra.mxu0 %v1166
    %v1532 = vpop.f32.mrf.mxu0
    %v1533 = vadd.f32 %v1211, %v1532
    %v1534 = vpop.f32.mrf.mxu0
    %v1535 = vadd.f32 %v1215, %v1534
    %v1536 = vpop.f32.mrf.mxu0
    %v1537 = vadd.f32 %v1211, %v1536
    %v1538 = vpop.f32.mrf.mxu0
    %v1539 = vadd.f32 %v1215, %v1538
    %1540 = vmatprep.mubr.bf16.mxu0 %v1169
    %1541 = vmatmul.mubr.bf16.gmra.mxu0 %v1168
    %v1542 = vpop.f32.mrf.mxu0
    %v1543 = vadd.f32 %v1211, %v1542
    %v1544 = vpop.f32.mrf.mxu0
    %v1545 = vadd.f32 %v1215, %v1544
    %v1546 = vpop.f32.mrf.mxu0
    %v1547 = vadd.f32 %v1211, %v1546
    %v1548 = vpop.f32.mrf.mxu0
    %v1549 = vadd.f32 %v1215, %v1548
    %1550 = vmatprep.mubr.bf16.mxu0 %v1171
    %1551 = vmatmul.mubr.bf16.gmra.mxu0 %v1170
    %v1552 = vpop.f32.mrf.mxu0
    %v1553 = vadd.f32 %v1211, %v1552
    %v1554 = vpop.f32.mrf.mxu0
    %v1555 = vadd.f32 %v1215, %v1554
    %v1556 = vpop.f32.mrf.mxu0
    %v1557 = vadd.f32 %v1211, %v1556
    %v1558 = vpop.f32.mrf.mxu0
    %v1559 = vadd.f32 %v1215, %v1558
    %1560 = vmatprep.mubr.bf16.mxu0 %v1173
    %1561 = vmatmul.mubr.bf16.gmra.mxu0 %v1172
    %v1562 = vpop.f32.mrf.mxu0
    %v1563 = vadd.f32 %v1211, %v1562
    %v1564 = vpop.f32.mrf.mxu0
    %v1565 = vadd.f32 %v1215, %v1564
    %v1566 = vpop.f32.mrf.mxu0
    %v1567 = vadd.f32 %v1211, %v1566
    %v1568 = vpop.f32.mrf.mxu0
    %v1569 = vadd.f32 %v1215, %v1568
    %1570 = vdwg.mxu0
    %v1571 = vmax.f32 %v1413, 0.0
    %v1572 = vmax.f32 %v1415, 0.0
    %v1573 = vmax.f32 %v1417, 0.0
    %v1574 = vmax.f32 %v1419, 0.0
    %v1575 = vmax.f32 %v1423, 0.0
    %v1576 = vmax.f32 %v1425, 0.0
    %v1577 = vmax.f32 %v1427, 0.0
    %v1578 = vmax.f32 %v1429, 0.0
    %v1579 = vmax.f32 %v1433, 0.0
    %v1580 = vmax.f32 %v1435, 0.0
    %v1581 = vmax.f32 %v1437, 0.0
    %v1582 = vmax.f32 %v1439, 0.0
    %v1583 = vmax.f32 %v1443, 0.0
    %v1584 = vmax.f32 %v1445, 0.0
    %v1585 = vmax.f32 %v1447, 0.0
    %v1586 = vmax.f32 %v1449, 0.0
    %v1587 = vmax.f32 %v1453, 0.0
    %v1588 = vmax.f32 %v1455, 0.0
    %v1589 = vmax.f32 %v1457, 0.0
    %v1590 = vmax.f32 %v1459, 0.0
    %v1591 = vmax.f32 %v1463, 0.0
    %v1592 = vmax.f32 %v1465, 0.0
    %v1593 = vmax.f32 %v1467, 0.0
    %v1594 = vmax.f32 %v1469, 0.0
    %v1595 = vmax.f32 %v1473, 0.0
    %v1596 = vmax.f32 %v1475, 0.0
    %v1597 = vmax.f32 %v1477, 0.0
    %v1598 = vmax.f32 %v1479, 0.0
    %v1599 = vmax.f32 %v1483, 0.0
    %v1600 = vmax.f32 %v1485, 0.0
    %v1601 = vmax.f32 %v1487, 0.0
    %v1602 = vmax.f32 %v1489, 0.0
    %v1603 = vmax.f32 %v1493, 0.0
    %v1604 = vmax.f32 %v1495, 0.0
    %v1605 = vmax.f32 %v1497, 0.0
    %v1606 = vmax.f32 %v1499, 0.0
    %v1607 = vmax.f32 %v1503, 0.0
    %v1608 = vmax.f32 %v1505, 0.0
    %v1609 = vmax.f32 %v1507, 0.0
    %v1610 = vmax.f32 %v1509, 0.0
    %v1611 = vmax.f32 %v1513, 0.0
    %v1612 = vmax.f32 %v1515, 0.0
    %v1613 = vmax.f32 %v1517, 0.0
    %v1614 = vmax.f32 %v1519, 0.0
    %v1615 = vmax.f32 %v1523, 0.0
    %v1616 = vmax.f32 %v1525, 0.0
    %v1617 = vmax.f32 %v1527, 0.0
    %v1618 = vmax.f32 %v1529, 0.0
    %v1619 = vmax.f32 %v1533, 0.0
    %v1620 = vmax.f32 %v1535, 0.0
    %v1621 = vmax.f32 %v1537, 0.0
    %v1622 = vmax.f32 %v1539, 0.0
    %v1623 = vmax.f32 %v1543, 0.0
    %v1624 = vmax.f32 %v1545, 0.0
    %v1625 = vmax.f32 %v1547, 0.0
    %v1626 = vmax.f32 %v1549, 0.0
    %v1627 = vmax.f32 %v1553, 0.0
    %v1628 = vmax.f32 %v1555, 0.0
    %v1629 = vmax.f32 %v1557, 0.0
    %v1630 = vmax.f32 %v1559, 0.0
    %v1631 = vmax.f32 %v1563, 0.0
    %v1632 = vmax.f32 %v1565, 0.0
    %v1633 = vmax.f32 %v1567, 0.0
    %v1634 = vmax.f32 %v1569, 0.0
    %v1635 = vpack.c.bf16 %v1573, %v1571
    %v1636 = vpack.c.bf16 %v1574, %v1572
    %v1637 = vpack.c.bf16 %v1577, %v1575
    %v1638 = vpack.c.bf16 %v1578, %v1576
    %v1639 = vpack.c.bf16 %v1581, %v1579
    %v1640 = vpack.c.bf16 %v1582, %v1580
    %v1641 = vpack.c.bf16 %v1585, %v1583
    %v1642 = vpack.c.bf16 %v1586, %v1584
    %v1643 = vpack.c.bf16 %v1589, %v1587
    %v1644 = vpack.c.bf16 %v1590, %v1588
    %v1645 = vpack.c.bf16 %v1593, %v1591
    %v1646 = vpack.c.bf16 %v1594, %v1592
    %v1647 = vpack.c.bf16 %v1597, %v1595
    %v1648 = vpack.c.bf16 %v1598, %v1596
    %v1649 = vpack.c.bf16 %v1601, %v1599
    %v1650 = vpack.c.bf16 %v1602, %v1600
    %v1651 = vpack.c.bf16 %v1605, %v1603
    %v1652 = vpack.c.bf16 %v1606, %v1604
    %v1653 = vpack.c.bf16 %v1609, %v1607
    %v1654 = vpack.c.bf16 %v1610, %v1608
    %v1655 = vpack.c.bf16 %v1613, %v1611
    %v1656 = vpack.c.bf16 %v1614, %v1612
    %v1657 = vpack.c.bf16 %v1617, %v1615
    %v1658 = vpack.c.bf16 %v1618, %v1616
    %v1659 = vpack.c.bf16 %v1621, %v1619
    %v1660 = vpack.c.bf16 %v1622, %v1620
    %v1661 = vpack.c.bf16 %v1625, %v1623
    %v1662 = vpack.c.bf16 %v1626, %v1624
    %v1663 = vpack.c.bf16 %v1629, %v1627
    %v1664 = vpack.c.bf16 %v1630, %v1628
    %v1665 = vpack.c.bf16 %v1633, %v1631
    %v1666 = vpack.c.bf16 %v1634, %v1632
    %v1667 = vld [vmem:[#allocation8] sm:$0xf]
    %v1668 = vld [vmem:[#allocation8 + $0x4] sm:$0xf]
    %v1669 = vld [vmem:[#allocation8 + $0x8] sm:$0xf]
    %v1670 = vld [vmem:[#allocation8 + $0xc] sm:$0xf]
    %v1671 = vld [vmem:[#allocation8 + $0x10] sm:$0xf]
    %v1672 = vld [vmem:[#allocation8 + $0x14] sm:$0xf]
    %v1673 = vld [vmem:[#allocation8 + $0x18] sm:$0xf]
    %v1674 = vld [vmem:[#allocation8 + $0x1c] sm:$0xf]
    %v1675 = vld [vmem:[#allocation8 + $0x20] sm:$0xf]
    %v1676 = vld [vmem:[#allocation8 + $0x24] sm:$0xf]
    %v1677 = vld [vmem:[#allocation8 + $0x28] sm:$0xf]
    %v1678 = vld [vmem:[#allocation8 + $0x2c] sm:$0xf]
    %v1679 = vld [vmem:[#allocation8 + $0x30] sm:$0xf]
    %v1680 = vld [vmem:[#allocation8 + $0x34] sm:$0xf]
    %v1681 = vld [vmem:[#allocation8 + $0x38] sm:$0xf]
    %v1682 = vld [vmem:[#allocation8 + $0x3c] sm:$0xf]
    %v1683 = vld [vmem:[#allocation8 + $0x40] sm:$0xf]
    %v1684 = vld [vmem:[#allocation8 + $0x44] sm:$0xf]
    %v1685 = vld [vmem:[#allocation8 + $0x48] sm:$0xf]
    %v1686 = vld [vmem:[#allocation8 + $0x4c] sm:$0xf]
    %v1687 = vld [vmem:[#allocation8 + $0x50] sm:$0xf]
    %v1688 = vld [vmem:[#allocation8 + $0x54] sm:$0xf]
    %v1689 = vld [vmem:[#allocation8 + $0x58] sm:$0xf]
    %v1690 = vld [vmem:[#allocation8 + $0x5c] sm:$0xf]
    %v1691 = vld [vmem:[#allocation8 + $0x60] sm:$0xf]
    %v1692 = vld [vmem:[#allocation8 + $0x64] sm:$0xf]
    %v1693 = vld [vmem:[#allocation8 + $0x68] sm:$0xf]
    %v1694 = vld [vmem:[#allocation8 + $0x6c] sm:$0xf]
    %v1695 = vld [vmem:[#allocation8 + $0x70] sm:$0xf]
    %v1696 = vld [vmem:[#allocation8 + $0x74] sm:$0xf]
    %v1697 = vld [vmem:[#allocation8 + $0x78] sm:$0xf]
    %v1698 = vld [vmem:[#allocation8 + $0x7c] sm:$0xf]
    %v1699 = vld [vmem:[%s7] sm:$0x1]
    %v1701 = vlaneseq
    %v1702 = vshrl.u32 %v1701, 7
    %v1703 = vsub.s32 0, %v1702
    %v1704 = vrot.slane %v1699, %v1703
    %v1738 = vunpack.c.l.b16 %v1667
    %v1739 = vunpack.c.l.b16 %v1668
    %v1740 = vunpack.c.l.b16 %v1669
    %v1741 = vunpack.c.l.b16 %v1670
    %v1742 = vunpack.c.l.b16 %v1671
    %v1743 = vunpack.c.l.b16 %v1672
    %v1744 = vunpack.c.l.b16 %v1673
    %v1745 = vunpack.c.l.b16 %v1674
    %v1746 = vunpack.c.l.b16 %v1675
    %v1747 = vunpack.c.l.b16 %v1676
    %v1748 = vunpack.c.l.b16 %v1677
    %v1749 = vunpack.c.l.b16 %v1678
    %v1750 = vunpack.c.l.b16 %v1679
    %v1751 = vunpack.c.l.b16 %v1680
    %v1752 = vunpack.c.l.b16 %v1681
    %v1753 = vunpack.c.l.b16 %v1682
    %v1754 = vunpack.c.l.b16 %v1683
    %v1755 = vunpack.c.l.b16 %v1684
    %v1756 = vunpack.c.l.b16 %v1685
    %v1757 = vunpack.c.l.b16 %v1686
    %v1758 = vunpack.c.l.b16 %v1687
    %v1759 = vunpack.c.l.b16 %v1688
    %v1760 = vunpack.c.l.b16 %v1689
    %v1761 = vunpack.c.l.b16 %v1690
    %v1762 = vunpack.c.l.b16 %v1691
    %v1763 = vunpack.c.l.b16 %v1692
    %v1764 = vunpack.c.l.b16 %v1693
    %v1765 = vunpack.c.l.b16 %v1694
    %v1766 = vunpack.c.l.b16 %v1695
    %v1767 = vunpack.c.l.b16 %v1696
    %v1768 = vunpack.c.l.b16 %v1697
    %v1769 = vunpack.c.l.b16 %v1698
    %v1770 = vpack.c.b16 %v1739, %v1738
    %v1771 = vpack.c.b16 %v1741, %v1740
    %v1772 = vpack.c.b16 %v1743, %v1742
    %v1773 = vpack.c.b16 %v1745, %v1744
    %v1774 = vpack.c.b16 %v1747, %v1746
    %v1775 = vpack.c.b16 %v1749, %v1748
    %v1776 = vpack.c.b16 %v1751, %v1750
    %v1777 = vpack.c.b16 %v1753, %v1752
    %v1778 = vpack.c.b16 %v1755, %v1754
    %v1779 = vpack.c.b16 %v1757, %v1756
    %v1780 = vpack.c.b16 %v1759, %v1758
    %v1781 = vpack.c.b16 %v1761, %v1760
    %v1782 = vpack.c.b16 %v1763, %v1762
    %v1783 = vpack.c.b16 %v1765, %v1764
    %v1784 = vpack.c.b16 %v1767, %v1766
    %v1785 = vpack.c.b16 %v1769, %v1768
    %1802 = vmatprep.subr.bf16.mxu0 0
    %1803 = vmatpush1.bf16.msra.mxu0 %v1777
    %1804 = vmatprep.subr.bf16.mxu0 0
    %1805 = vmatpush1.bf16.msra.mxu0 %v1776
    %1806 = vmatprep.subr.bf16.mxu0 0
    %1807 = vmatpush1.bf16.msra.mxu0 %v1775
    %1808 = vmatprep.subr.bf16.mxu0 0
    %1809 = vmatpush1.bf16.msra.mxu0 %v1774
    %1810 = vmatprep.subr.bf16.mxu0 0
    %1811 = vmatpush1.bf16.msra.mxu0 %v1773
    %1812 = vmatprep.subr.bf16.mxu0 0
    %1813 = vmatpush1.bf16.msra.mxu0 %v1772
    %1814 = vmatprep.subr.bf16.mxu0 0
    %1815 = vmatpush1.bf16.msra.mxu0 %v1771
    %1816 = vmatprep.subr.bf16.mxu0 0
    %1817 = vmatpush1.bf16.msra.mxu0 %v1770
    %1818 = vmatprep.subr.bf16.mxu0 0
    %1819 = vmatpush2.bf16.msra.mxu0 %v1785
    %1820 = vmatprep.subr.bf16.mxu0 0
    %1821 = vmatpush2.bf16.msra.mxu0 %v1784
    %1822 = vmatprep.subr.bf16.mxu0 0
    %1823 = vmatpush2.bf16.msra.mxu0 %v1783
    %1824 = vmatprep.subr.bf16.mxu0 0
    %1825 = vmatpush2.bf16.msra.mxu0 %v1782
    %1826 = vmatprep.subr.bf16.mxu0 0
    %1827 = vmatpush2.bf16.msra.mxu0 %v1781
    %1828 = vmatprep.subr.bf16.mxu0 0
    %1829 = vmatpush2.bf16.msra.mxu0 %v1780
    %1830 = vmatprep.subr.bf16.mxu0 0
    %1831 = vmatpush2.bf16.msra.mxu0 %v1779
    %1832 = vmatprep.subr.bf16.mxu0 0
    %1833 = vmatpush2.bf16.msra.mxu0 %v1778
    %1834 = vmatprep.mubr.bf16.mxu0 %v1636
    %1835 = vmatmul.mubr.bf16.gmra.mxu0 %v1635
    %v1836 = vpop.f32.mrf.mxu0
    %v1837 = vadd.f32 %v1704, %v1836
    %v1838 = vpop.f32.mrf.mxu0
    %v1839 = vpop.f32.mrf.mxu0
    %v1840 = vadd.f32 %v1704, %v1839
    %v1841 = vpop.f32.mrf.mxu0
    %1842 = vmatprep.mubr.bf16.mxu0 %v1638
    %1843 = vmatmul.mubr.bf16.gmra.mxu0 %v1637
    %v1844 = vpop.f32.mrf.mxu0
    %v1845 = vadd.f32 %v1704, %v1844
    %v1846 = vpop.f32.mrf.mxu0
    %v1847 = vpop.f32.mrf.mxu0
    %v1848 = vadd.f32 %v1704, %v1847
    %v1849 = vpop.f32.mrf.mxu0
    %1850 = vmatprep.mubr.bf16.mxu0 %v1640
    %1851 = vmatmul.mubr.bf16.gmra.mxu0 %v1639
    %v1852 = vpop.f32.mrf.mxu0
    %v1853 = vadd.f32 %v1704, %v1852
    %v1854 = vpop.f32.mrf.mxu0
    %v1855 = vpop.f32.mrf.mxu0
    %v1856 = vadd.f32 %v1704, %v1855
    %v1857 = vpop.f32.mrf.mxu0
    %1858 = vmatprep.mubr.bf16.mxu0 %v1642
    %1859 = vmatmul.mubr.bf16.gmra.mxu0 %v1641
    %v1860 = vpop.f32.mrf.mxu0
    %v1861 = vadd.f32 %v1704, %v1860
    %v1862 = vpop.f32.mrf.mxu0
    %v1863 = vpop.f32.mrf.mxu0
    %v1864 = vadd.f32 %v1704, %v1863
    %v1865 = vpop.f32.mrf.mxu0
    %1866 = vmatprep.mubr.bf16.mxu0 %v1644
    %1867 = vmatmul.mubr.bf16.gmra.mxu0 %v1643
    %v1868 = vpop.f32.mrf.mxu0
    %v1869 = vadd.f32 %v1704, %v1868
    %v1870 = vpop.f32.mrf.mxu0
    %v1871 = vpop.f32.mrf.mxu0
    %v1872 = vadd.f32 %v1704, %v1871
    %v1873 = vpop.f32.mrf.mxu0
    %1874 = vmatprep.mubr.bf16.mxu0 %v1646
    %1875 = vmatmul.mubr.bf16.gmra.mxu0 %v1645
    %v1876 = vpop.f32.mrf.mxu0
    %v1877 = vadd.f32 %v1704, %v1876
    %v1878 = vpop.f32.mrf.mxu0
    %v1879 = vpop.f32.mrf.mxu0
    %v1880 = vadd.f32 %v1704, %v1879
    %v1881 = vpop.f32.mrf.mxu0
    %1882 = vmatprep.mubr.bf16.mxu0 %v1648
    %1883 = vmatmul.mubr.bf16.gmra.mxu0 %v1647
    %v1884 = vpop.f32.mrf.mxu0
    %v1885 = vadd.f32 %v1704, %v1884
    %v1886 = vpop.f32.mrf.mxu0
    %v1887 = vpop.f32.mrf.mxu0
    %v1888 = vadd.f32 %v1704, %v1887
    %v1889 = vpop.f32.mrf.mxu0
    %1890 = vmatprep.mubr.bf16.mxu0 %v1650
    %1891 = vmatmul.mubr.bf16.gmra.mxu0 %v1649
    %v1892 = vpop.f32.mrf.mxu0
    %v1893 = vadd.f32 %v1704, %v1892
    %v1894 = vpop.f32.mrf.mxu0
    %v1895 = vpop.f32.mrf.mxu0
    %v1896 = vadd.f32 %v1704, %v1895
    %v1897 = vpop.f32.mrf.mxu0
    %1898 = vmatprep.mubr.bf16.mxu0 %v1652
    %1899 = vmatmul.mubr.bf16.gmra.mxu0 %v1651
    %v1900 = vpop.f32.mrf.mxu0
    %v1901 = vadd.f32 %v1704, %v1900
    %v1902 = vpop.f32.mrf.mxu0
    %v1903 = vpop.f32.mrf.mxu0
    %v1904 = vadd.f32 %v1704, %v1903
    %v1905 = vpop.f32.mrf.mxu0
    %1906 = vmatprep.mubr.bf16.mxu0 %v1654
    %1907 = vmatmul.mubr.bf16.gmra.mxu0 %v1653
    %v1908 = vpop.f32.mrf.mxu0
    %v1909 = vadd.f32 %v1704, %v1908
    %v1910 = vpop.f32.mrf.mxu0
    %v1911 = vpop.f32.mrf.mxu0
    %v1912 = vadd.f32 %v1704, %v1911
    %v1913 = vpop.f32.mrf.mxu0
    %1914 = vmatprep.mubr.bf16.mxu0 %v1656
    %1915 = vmatmul.mubr.bf16.gmra.mxu0 %v1655
    %v1916 = vpop.f32.mrf.mxu0
    %v1917 = vadd.f32 %v1704, %v1916
    %v1918 = vpop.f32.mrf.mxu0
    %v1919 = vpop.f32.mrf.mxu0
    %v1920 = vadd.f32 %v1704, %v1919
    %v1921 = vpop.f32.mrf.mxu0
    %1922 = vmatprep.mubr.bf16.mxu0 %v1658
    %1923 = vmatmul.mubr.bf16.gmra.mxu0 %v1657
    %v1924 = vpop.f32.mrf.mxu0
    %v1925 = vadd.f32 %v1704, %v1924
    %v1926 = vpop.f32.mrf.mxu0
    %v1927 = vpop.f32.mrf.mxu0
    %v1928 = vadd.f32 %v1704, %v1927
    %v1929 = vpop.f32.mrf.mxu0
    %1930 = vmatprep.mubr.bf16.mxu0 %v1660
    %1931 = vmatmul.mubr.bf16.gmra.mxu0 %v1659
    %v1932 = vpop.f32.mrf.mxu0
    %v1933 = vadd.f32 %v1704, %v1932
    %v1934 = vpop.f32.mrf.mxu0
    %v1935 = vpop.f32.mrf.mxu0
    %v1936 = vadd.f32 %v1704, %v1935
    %v1937 = vpop.f32.mrf.mxu0
    %1938 = vmatprep.mubr.bf16.mxu0 %v1662
    %1939 = vmatmul.mubr.bf16.gmra.mxu0 %v1661
    %v1940 = vpop.f32.mrf.mxu0
    %v1941 = vadd.f32 %v1704, %v1940
    %v1942 = vpop.f32.mrf.mxu0
    %v1943 = vpop.f32.mrf.mxu0
    %v1944 = vadd.f32 %v1704, %v1943
    %v1945 = vpop.f32.mrf.mxu0
    %1946 = vmatprep.mubr.bf16.mxu0 %v1664
    %1947 = vmatmul.mubr.bf16.gmra.mxu0 %v1663
    %v1948 = vpop.f32.mrf.mxu0
    %v1949 = vadd.f32 %v1704, %v1948
    %v1950 = vpop.f32.mrf.mxu0
    %v1951 = vpop.f32.mrf.mxu0
    %v1952 = vadd.f32 %v1704, %v1951
    %v1953 = vpop.f32.mrf.mxu0
    %1954 = vmatprep.mubr.bf16.mxu0 %v1666
    %1955 = vmatmul.mubr.bf16.gmra.mxu0 %v1665
    %v1956 = vpop.f32.mrf.mxu0
    %v1957 = vadd.f32 %v1704, %v1956
    %v1958 = vpop.f32.mrf.mxu0
    %v1959 = vpop.f32.mrf.mxu0
    %v1960 = vadd.f32 %v1704, %v1959
    %v1961 = vpop.f32.mrf.mxu0
    %1962 = vdwg.mxu0
    %1963 = vst [vmem:[#allocation9] sm:$0xff] %v1837
    %1964 = vst [vmem:[#allocation9 + $0x8] sm:$0xff] %v1840
    %1965 = vst [vmem:[#allocation9 + $0x10] sm:$0xff] %v1845
    %1966 = vst [vmem:[#allocation9 + $0x18] sm:$0xff] %v1848
    %1967 = vst [vmem:[#allocation9 + $0x20] sm:$0xff] %v1853
    %1968 = vst [vmem:[#allocation9 + $0x28] sm:$0xff] %v1856
    %1969 = vst [vmem:[#allocation9 + $0x30] sm:$0xff] %v1861
    %1970 = vst [vmem:[#allocation9 + $0x38] sm:$0xff] %v1864
    %1971 = vst [vmem:[#allocation9 + $0x40] sm:$0xff] %v1869
    %1972 = vst [vmem:[#allocation9 + $0x48] sm:$0xff] %v1872
    %1973 = vst [vmem:[#allocation9 + $0x50] sm:$0xff] %v1877
    %1974 = vst [vmem:[#allocation9 + $0x58] sm:$0xff] %v1880
    %1975 = vst [vmem:[#allocation9 + $0x60] sm:$0xff] %v1885
    %1976 = vst [vmem:[#allocation9 + $0x68] sm:$0xff] %v1888
    %1977 = vst [vmem:[#allocation9 + $0x70] sm:$0xff] %v1893
    %1978 = vst [vmem:[#allocation9 + $0x78] sm:$0xff] %v1896
    %1979 = vst [vmem:[#allocation9 + $0x80] sm:$0xff] %v1901
    %1980 = vst [vmem:[#allocation9 + $0x88] sm:$0xff] %v1904
    %1981 = vst [vmem:[#allocation9 + $0x90] sm:$0xff] %v1909
    %1982 = vst [vmem:[#allocation9 + $0x98] sm:$0xff] %v1912
    %1983 = vst [vmem:[#allocation9 + $0xa0] sm:$0xff] %v1917
    %1984 = vst [vmem:[#allocation9 + $0xa8] sm:$0xff] %v1920
    %1985 = vst [vmem:[#allocation9 + $0xb0] sm:$0xff] %v1925
    %1986 = vst [vmem:[#allocation9 + $0xb8] sm:$0xff] %v1928
    %1987 = vst [vmem:[#allocation9 + $0xc0] sm:$0xff] %v1933
    %1988 = vst [vmem:[#allocation9 + $0xc8] sm:$0xff] %v1936
    %1989 = vst [vmem:[#allocation9 + $0xd0] sm:$0xff] %v1941
    %1990 = vst [vmem:[#allocation9 + $0xd8] sm:$0xff] %v1944
    %1991 = vst [vmem:[#allocation9 + $0xe0] sm:$0xff] %v1949
    %1992 = vst [vmem:[#allocation9 + $0xe8] sm:$0xff] %v1952
    %1993 = vst [vmem:[#allocation9 + $0xf0] sm:$0xff] %v1957
    %1994 = vst [vmem:[#allocation9 + $0xf8] sm:$0xff] %v1960
    // Predicated region
    $region46: #{tpu_custom_call.1} parent=1 // pred_check
      _
    $region47: #{tpu_custom_call.1} parent=1 // pred_check_branch
      %1996 = sbr.rel (0) target = $region49
    $region48: #{tpu_custom_call.1} parent=1 // pred_region
      %s1998 = ssub.s32 4096, 4096
      %1999 = vsyncadd [#allocation5], %s1998
      %s2000 = sshll.u32 [#allocation9], 4
      %s2001 = int_to_ptr.vmem [resolvable:$true] %s2000
      %2006 = dma.vmem_to_hbm [thread:$0]  %s2001, 4096, %s8, [#allocation5], 128, 128, 8
    $region49: #{tpu_custom_call.1} parent=1 // pred_fallthru
      _
    // Predicated region
    $region50: #{tpu_custom_call.1} parent=1 // pred_check
      _
    $region51: #{tpu_custom_call.1} parent=1 // pred_check_branch
      %2008 = sbr.rel (0) target = $region53
    $region52: #{tpu_custom_call.1} parent=1 // pred_region
      %2009 = dma.done [#allocation5], 4096
    $region53: #{tpu_custom_call.1} parent=1 // pred_fallthru
      _
    %2010 = vsyncpa [#allocation4], 1
    %2011 = vsyncpa [#allocation7], 1
    %2012 = vsyncpa [#allocation5], 1

</llo_original>
